<compile_context>
chip_gen: v7x
topology: tpu7x:2x2x1
jax: 0.10.0
libtpu: 0.0.40
codegen_flags: <defaults>
</compile_context>

<pallas_src>
import math

import jax
import jax.numpy as jnp
from jax import lax
from jax.experimental import pallas as pl
from jax.experimental.pallas import tpu as pltpu

# ---------------- small synthetic PhoBERT config ----------------
VOCAB = 64        # vocab size
B = 2             # batch
S = 8             # sequence length
H = 32            # hidden size
NH = 2            # attention heads
HD = H // NH      # head dim
FF = 64           # intermediate (FFN) size
L = 2             # encoder layers
NUM_LABELS = 3
LN_EPS = 1e-5
LOGIT_PAD = 128   # lane-dense logits width; sliced to NUM_LABELS in wrapper

# ---- packed-slab layout (all column offsets 128-lane aligned) ----
W_ROWS = max(H, FF)            # 64 rows in the weight slab
COL_QKV = 0                    # (H, 3H)   rows 0:H
COL_WO = 128                   # (H, H)    rows 0:H   (head-major rows)
COL_FF1 = 256                  # (H, FF)   rows 0:H
COL_FF2 = 384                  # (FF, H)   rows 0:FF
COL_WD = 512                   # (H, H)    rows 0:H   layer-0 slot only
COL_WOUT = 640                 # (H, 128)  rows 0:H   layer-0 slot only
W_COLS = 768

VEC_ROWS = L * 8 + 8           # 8 per-layer rows + global rows, padded
ROW_GLOB = L * 8               # emb_ln_g, emb_ln_b, head bd, head bout


def _layernorm(x, g, b):
    mu = jnp.mean(x, axis=-1, keepdims=True)
    var = jnp.mean((x - mu) ** 2, axis=-1, keepdims=True)
    return (x - mu) * jax.lax.rsqrt(var + LN_EPS) * g + b


def _gelu(x):
    # TODO(synk): HF RoBERTa uses erf-based GELU; tanh approximation used here.
    c = math.sqrt(2.0 / math.pi)
    return 0.5 * x * (1.0 + jnp.tanh(c * (x + 0.044715 * x * x * x)))


# Contract the minor dim of both operands (q @ k^T) — maps to the MXU
# transposed-RHS path without a separate per-head relayout.
_TRANS_B = (((1,), (1,)), ((), ()))


def phobert_kernel(x_ref, bias_ref, w_ref, vec_ref, out_ref):
    f32, bf16 = jnp.float32, jnp.bfloat16

    x = x_ref[...]                       # (S, H) f32, one batch element
    bias_row = bias_ref[0]               # (1, S) additive key-mask bias

    # Embedding LayerNorm (RoBERTa applies LN right after embeddings).
    emb_g = vec_ref[ROW_GLOB + 0:ROW_GLOB + 1, 0:H]
    emb_b = vec_ref[ROW_GLOB + 1:ROW_GLOB + 2, 0:H]
    x = _layernorm(x, emb_g, emb_b)

    for l in range(L):                   # static unroll, L is small
        r = l * 8
        b_qkv = vec_ref[r + 0:r + 1, 0:3 * H]
        b_o = vec_ref[r + 1:r + 2, 0:H]
        b_f1 = vec_ref[r + 2:r + 3, 0:FF]
        b_f2 = vec_ref[r + 3:r + 4, 0:H]
        ln1g = vec_ref[r + 4:r + 5, 0:H]
        ln1b = vec_ref[r + 5:r + 6, 0:H]
        ln2g = vec_ref[r + 6:r + 7, 0:H]
        ln2b = vec_ref[r + 7:r + 8, 0:H]

        w_qkv = w_ref[l, 0:H, COL_QKV:COL_QKV + 3 * H]     # (H, 3H)  bf16
        w_f1 = w_ref[l, 0:H, COL_FF1:COL_FF1 + FF]         # (H, FF)
        w_f2 = w_ref[l, 0:FF, COL_FF2:COL_FF2 + H]         # (FF, H)

        # ---- fused QKV projection (1/sqrt(HD) folded into W_q, b_q) ----
        qkv = jnp.dot(x.astype(bf16), w_qkv,
                      preferred_element_type=f32) + b_qkv   # (S, 3H) f32

        # ---- per-head attention on contiguous lane slices (no stack/concat) --
        attn = b_o                                           # (1, H), broadcasts
        for n in range(NH):                                  # static unroll
            q_n = qkv[:, n * HD:(n + 1) * HD].astype(bf16)                 # (S, HD)
            k_n = qkv[:, H + n * HD:H + (n + 1) * HD].astype(bf16)         # (S, HD)
            v_n = qkv[:, 2 * H + n * HD:2 * H + (n + 1) * HD].astype(bf16)
            w_o_n = w_ref[l, n * HD:(n + 1) * HD, COL_WO:COL_WO + H]       # (HD, H)

            sc = lax.dot_general(q_n, k_n, _TRANS_B,
                                 preferred_element_type=f32) + bias_row    # (S, S)
            m = jnp.max(sc, axis=-1, keepdims=True)
            e = jnp.exp(sc - m)
            p = e * pl.reciprocal(jnp.sum(e, axis=-1, keepdims=True), approx=True)
            ctx = jnp.dot(p.astype(bf16), v_n, preferred_element_type=f32)  # (S, HD)
            attn = attn + jnp.dot(ctx.astype(bf16), w_o_n,
                                  preferred_element_type=f32)               # (S, H)

        x = _layernorm(x + attn, ln1g, ln1b)

        # ---- feed-forward ----
        h = _gelu(jnp.dot(x.astype(bf16), w_f1, preferred_element_type=f32) + b_f1)
        ffn = jnp.dot(h.astype(bf16), w_f2, preferred_element_type=f32) + b_f2
        x = _layernorm(x + ffn, ln2g, ln2b)

    # ---- classification head ----
    # TODO(synk): nn.Dropout(0.1) between dense and out_proj is identity at eval.
    # Computed for all S positions so the store is a full unmasked (8,128) tile;
    # the wrapper keeps only the <s> (position-0) row per batch element.
    wd = w_ref[0, 0:H, COL_WD:COL_WD + H]                    # (H, H)    bf16
    wout = w_ref[0, 0:H, COL_WOUT:COL_WOUT + LOGIT_PAD]      # (H, 128)  bf16
    bd = vec_ref[ROW_GLOB + 2:ROW_GLOB + 3, 0:H]             # (1, H)
    bout = vec_ref[ROW_GLOB + 3:ROW_GLOB + 4, :]             # (1, 128)
    hdn = jnp.tanh(jnp.dot(x.astype(bf16), wd, preferred_element_type=f32) + bd)
    logits = jnp.dot(hdn.astype(bf16), wout, preferred_element_type=f32) + bout
    out_ref[...] = logits.astype(out_ref.dtype)              # (S, 128) full tile


def init_params(key):
    def nrm(k, shape):
        return (0.02 * jax.random.normal(k, shape)).astype(jnp.float32)

    ks = jax.random.split(key, 16)
    p = {
        'word_emb': nrm(ks[0], (VOCAB, H)),
        'pos_emb': nrm(ks[1], (S, H)),
        'type_emb': nrm(ks[2], (1, H)),
        'emb_lng': jnp.ones((1, H), jnp.float32),
        'emb_lnb': jnp.zeros((1, H), jnp.float32),
        'wq': nrm(ks[3], (L, NH, H, HD)), 'bq': jnp.zeros((L, NH, 1, HD), jnp.float32),
        'wk': nrm(ks[4], (L, NH, H, HD)), 'bk': jnp.zeros((L, NH, 1, HD), jnp.float32),
        'wv': nrm(ks[5], (L, NH, H, HD)), 'bv': jnp.zeros((L, NH, 1, HD), jnp.float32),
        'wo': nrm(ks[6], (L, NH, HD, H)), 'bo': jnp.zeros((L, 1, H), jnp.float32),
        'ln1g': jnp.ones((L, 1, H), jnp.float32), 'ln1b': jnp.zeros((L, 1, H), jnp.float32),
        'w1': nrm(ks[7], (L, H, FF)), 'b1': jnp.zeros((L, 1, FF), jnp.float32),
        'w2': nrm(ks[8], (L, FF, H)), 'b2': jnp.zeros((L, 1, H), jnp.float32),
        'ln2g': jnp.ones((L, 1, H), jnp.float32), 'ln2b': jnp.zeros((L, 1, H), jnp.float32),
        'wd': nrm(ks[9], (H, H)), 'bd': jnp.zeros((1, H), jnp.float32),
        'wout': nrm(ks[10], (H, NUM_LABELS)), 'bout': jnp.zeros((1, NUM_LABELS), jnp.float32),
    }
    return p


def pack_params(p):
    """Pack all parameters into two contiguous slabs (2 input DMAs).

    Weight slab: bf16 (MXU operands), every sub-matrix starts at a 128-lane
    boundary.  Vector slab: f32 biases / LN params, one 128-lane row each.
    The 1/sqrt(HD) attention scale is folded into W_q and b_q here.
    """
    f32, bf16 = jnp.float32, jnp.bfloat16
    scale = 1.0 / math.sqrt(HD)

    def fuse_heads_w(w):   # (L, NH, H, HD) -> (L, H, NH*HD), heads along columns
        return jnp.transpose(w, (0, 2, 1, 3)).reshape(L, H, NH * HD)

    def fuse_heads_b(b):   # (L, NH, 1, HD) -> (L, NH*HD)
        return jnp.transpose(b, (0, 2, 1, 3)).reshape(L, NH * HD)

    w_slab = jnp.zeros((L, W_ROWS, W_COLS), f32)
    w_slab = w_slab.at[:, 0:H, COL_QKV:COL_QKV + H].set(fuse_heads_w(p['wq']) * scale)
    w_slab = w_slab.at[:, 0:H, COL_QKV + H:COL_QKV + 2 * H].set(fuse_heads_w(p['wk']))
    w_slab = w_slab.at[:, 0:H, COL_QKV + 2 * H:COL_QKV + 3 * H].set(fuse_heads_w(p['wv']))
    w_slab = w_slab.at[:, 0:H, COL_WO:COL_WO + H].set(p['wo'].reshape(L, NH * HD, H))
    w_slab = w_slab.at[:, 0:H, COL_FF1:COL_FF1 + FF].set(p['w1'])
    w_slab = w_slab.at[:, 0:FF, COL_FF2:COL_FF2 + H].set(p['w2'])
    w_slab = w_slab.at[0, 0:H, COL_WD:COL_WD + H].set(p['wd'])
    w_slab = w_slab.at[0, 0:H, COL_WOUT:COL_WOUT + NUM_LABELS].set(p['wout'])
    w_slab = w_slab.astype(bf16)

    vec_slab = jnp.zeros((VEC_ROWS, 128), f32)
    bq = fuse_heads_b(p['bq']) * scale
    bk = fuse_heads_b(p['bk'])
    bv = fuse_heads_b(p['bv'])
    for l in range(L):
        r = l * 8
        vec_slab = vec_slab.at[r + 0, 0:H].set(bq[l])
        vec_slab = vec_slab.at[r + 0, H:2 * H].set(bk[l])
        vec_slab = vec_slab.at[r + 0, 2 * H:3 * H].set(bv[l])
        vec_slab = vec_slab.at[r + 1, 0:H].set(p['bo'][l, 0])
        vec_slab = vec_slab.at[r + 2, 0:FF].set(p['b1'][l, 0])
        vec_slab = vec_slab.at[r + 3, 0:H].set(p['b2'][l, 0])
        vec_slab = vec_slab.at[r + 4, 0:H].set(p['ln1g'][l, 0])
        vec_slab = vec_slab.at[r + 5, 0:H].set(p['ln1b'][l, 0])
        vec_slab = vec_slab.at[r + 6, 0:H].set(p['ln2g'][l, 0])
        vec_slab = vec_slab.at[r + 7, 0:H].set(p['ln2b'][l, 0])
    vec_slab = vec_slab.at[ROW_GLOB + 0, 0:H].set(p['emb_lng'][0])
    vec_slab = vec_slab.at[ROW_GLOB + 1, 0:H].set(p['emb_lnb'][0])
    vec_slab = vec_slab.at[ROW_GLOB + 2, 0:H].set(p['bd'][0])
    vec_slab = vec_slab.at[ROW_GLOB + 3, 0:NUM_LABELS].set(p['bout'][0])

    return w_slab, vec_slab


def phobert_classifier_forward(input_ids, attention_mask, params):
    """Returns logits of shape (B, NUM_LABELS), matching `outputs.logits`."""
    w_slab, vec_slab = pack_params(params)

    # Embedding lookup (glue, plain JAX gather), flattened to 2-D activations.
    pos = jnp.arange(S)
    x = (params['word_emb'][input_ids]
         + params['pos_emb'][pos][None, :, :]
         + params['type_emb'][0][None, None, :]).astype(jnp.float32)
    x2d = x.reshape(B * S, H)

    # Additive key-mask bias, un-tiled: (B, 1, S); broadcast inside the kernel.
    bias = ((1.0 - attention_mask.astype(jnp.float32)) * -1e4).reshape(B, 1, S)

    logits_all = pl.pallas_call(
        phobert_kernel,
        out_shape=jax.ShapeDtypeStruct((B * S, LOGIT_PAD), jnp.float32),
        grid=(B,),
        in_specs=[
            pl.BlockSpec((S, H), lambda b: (b, 0)),                  # activations
            pl.BlockSpec((1, 1, S), lambda b: (b, 0, 0)),            # mask bias
            pl.BlockSpec((L, W_ROWS, W_COLS), lambda b: (0, 0, 0)),  # weight slab
            pl.BlockSpec((VEC_ROWS, 128), lambda b: (0, 0)),         # vector slab
        ],
        out_specs=pl.BlockSpec((S, LOGIT_PAD), lambda b: (b, 0)),
        compiler_params=pltpu.CompilerParams(
            dimension_semantics=("parallel",)),
    )(x2d, bias, w_slab, vec_slab)

    # Keep the <s> (position-0) token row per batch element, slice to labels.
    return logits_all.reshape(B, S, LOGIT_PAD)[:, 0, :NUM_LABELS]


def _reference_forward(input_ids, attention_mask, p):
    """Pure-JAX f32 reference with identical math, for correctness checking."""
    pos = jnp.arange(S)
    x = (p['word_emb'][input_ids] + p['pos_emb'][pos][None] +
         p['type_emb'][0][None, None]).astype(jnp.float32)
    bias = (1.0 - attention_mask.astype(jnp.float32))[:, None, :] * -1e4
    x = _layernorm(x, p['emb_lng'], p['emb_lnb'])
    scale = 1.0 / math.sqrt(HD)
    for l in range(L):
        attn_out = jnp.zeros((B, S, H), jnp.float32)
        for n in range(NH):
            q = jnp.einsum('bsh,hd->bsd', x, p['wq'][l, n]) + p['bq'][l, n]
            k = jnp.einsum('bsh,hd->bsd', x, p['wk'][l, n]) + p['bk'][l, n]
            v = jnp.einsum('bsh,hd->bsd', x, p['wv'][l, n]) + p['bv'][l, n]
            s = jnp.einsum('bqd,bkd->bqk', q, k) * scale + bias
            prob = jax.nn.softmax(s, axis=-1)
            ctx = jnp.einsum('bqk,bkd->bqd', prob, v)
            attn_out = attn_out + jnp.einsum('bqd,dh->bqh', ctx, p['wo'][l, n])
        attn_out = attn_out + p['bo'][l]
        x = _layernorm(x + attn_out, p['ln1g'][l], p['ln1b'][l])
        h = _gelu(jnp.einsum('bsh,hi->bsi', x, p['w1'][l]) + p['b1'][l])
        ffn = jnp.einsum('bsi,ih->bsh', h, p['w2'][l]) + p['b2'][l]
        x = _layernorm(x + ffn, p['ln2g'][l], p['ln2b'][l])
    cls = x[:, 0, :]
    hd = jnp.tanh(cls @ p['wd'] + p['bd'])
    return hd @ p['wout'] + p['bout']


if __name__ == "__main__":
    key = jax.random.PRNGKey(0)
    k_ids, k_params = jax.random.split(key)

    input_ids = jax.random.randint(k_ids, (B, S), 0, VOCAB, dtype=jnp.int32)
    attention_mask = jnp.ones((B, S), jnp.int32).at[1, S - 2:].set(0)  # pad row-1 tail

    params = init_params(k_params)

    logits = phobert_classifier_forward(input_ids, attention_mask, params)
    logits = jax.block_until_ready(logits)

    ref = _reference_forward(input_ids, attention_mask, params)
    assert logits.shape == (B, NUM_LABELS)
    assert bool(jnp.all(jnp.isfinite(logits)))
    # Tolerance accounts for bf16 MXU operands + approx reciprocal vs f32 ref.
    assert bool(jnp.allclose(logits, ref, rtol=3e-2, atol=5e-3)), (logits, ref)

    print("KERNEL_OK")
</pallas_src>

<mosaic_0001>
module attributes {stable_mosaic.version = 11 : i64} {
  func.func @phobert_kernel(%arg0: i32, %arg1: memref<8x32xf32, #tpu.memory_space<vmem>>, %arg2: memref<1x1x8xf32, #tpu.memory_space<vmem>>, %arg3: memref<2x64x768xbf16, #tpu.memory_space<vmem>>, %arg4: memref<24x128xf32, #tpu.memory_space<vmem>>, %arg5: memref<8x128xf32, #tpu.memory_space<vmem>>) attributes {dimension_semantics = [#tpu.dimension_semantics<parallel>], iteration_bounds = array<i64: 2>, scalar_prefetch = 0 : i64, scratch_operands = 0 : i64, tpu.core_type = #tpu.core_type<tc>, window_params = [{transform_indices = @transform_0, window_bounds = array<i64: 8, 32>}, {transform_indices = @transform_1, window_bounds = array<i64: 1, 1, 8>}, {pipeline_mode = #tpu.pipeline_mode<synchronous>, transform_indices = @transform_2, window_bounds = array<i64: 2, 64, 768>}, {pipeline_mode = #tpu.pipeline_mode<synchronous>, transform_indices = @transform_3, window_bounds = array<i64: 24, 128>}, {transform_indices = @transform_4, window_bounds = array<i64: 8, 128>}]} {
    %c0 = arith.constant 0 : index
    %c0_0 = arith.constant 0 : index
    %0 = vector.load %arg1[%c0, %c0_0] : memref<8x32xf32, #tpu.memory_space<vmem>>, vector<8x32xf32>
    %c0_1 = arith.constant 0 : index
    %c0_2 = arith.constant 0 : index
    %c0_3 = arith.constant 0 : index
    %1 = vector.load %arg2[%c0_1, %c0_2, %c0_3] : memref<1x1x8xf32, #tpu.memory_space<vmem>>, vector<1x1x8xf32>
    %2 = vector.shape_cast %1 : vector<1x1x8xf32> to vector<1x8xf32>
    %c16 = arith.constant 16 : index
    %c0_4 = arith.constant 0 : index
    %3 = vector.load %arg4[%c16, %c0_4] : memref<24x128xf32, #tpu.memory_space<vmem>>, vector<1x32xf32>
    %c17 = arith.constant 17 : index
    %c0_5 = arith.constant 0 : index
    %4 = vector.load %arg4[%c17, %c0_5] : memref<24x128xf32, #tpu.memory_space<vmem>>, vector<1x32xf32>
    %cst = arith.constant dense<0.000000e+00> : vector<8xf32>
    %5 = vector.multi_reduction <add>, %0, %cst [1] : vector<8x32xf32> to vector<8xf32>
    %6 = vector.shape_cast %5 : vector<8xf32> to vector<8x1xf32>
    %cst_6 = arith.constant 3.200000e+01 : f32
    %7 = vector.broadcast %cst_6 : f32 to vector<8x1xf32>
    %8 = arith.divf %6, %7 : vector<8x1xf32>
    %9 = vector.broadcast %8 : vector<8x1xf32> to vector<8x32xf32>
    %10 = arith.subf %0, %9 : vector<8x32xf32>
    %11 = arith.mulf %10, %10 : vector<8x32xf32>
    %cst_7 = arith.constant dense<0.000000e+00> : vector<8xf32>
    %12 = vector.multi_reduction <add>, %11, %cst_7 [1] : vector<8x32xf32> to vector<8xf32>
    %13 = vector.shape_cast %12 : vector<8xf32> to vector<8x1xf32>
    %cst_8 = arith.constant 3.200000e+01 : f32
    %14 = vector.broadcast %cst_8 : f32 to vector<8x1xf32>
    %15 = arith.divf %13, %14 : vector<8x1xf32>
    %16 = vector.broadcast %8 : vector<8x1xf32> to vector<8x32xf32>
    %17 = arith.subf %0, %16 : vector<8x32xf32>
    %cst_9 = arith.constant 9.99999974E-6 : f32
    %18 = vector.broadcast %cst_9 : f32 to vector<8x1xf32>
    %19 = arith.addf %15, %18 : vector<8x1xf32>
    %20 = math.rsqrt %19 : vector<8x1xf32>
    %21 = vector.broadcast %20 : vector<8x1xf32> to vector<8x32xf32>
    %22 = arith.mulf %17, %21 : vector<8x32xf32>
    %23 = vector.broadcast %3 : vector<1x32xf32> to vector<8x32xf32>
    %24 = arith.mulf %22, %23 : vector<8x32xf32>
    %25 = vector.broadcast %4 : vector<1x32xf32> to vector<8x32xf32>
    %26 = arith.addf %24, %25 : vector<8x32xf32>
    %c0_10 = arith.constant 0 : index
    %c0_11 = arith.constant 0 : index
    %27 = vector.load %arg4[%c0_10, %c0_11] : memref<24x128xf32, #tpu.memory_space<vmem>>, vector<1x96xf32>
    %c1 = arith.constant 1 : index
    %c0_12 = arith.constant 0 : index
    %28 = vector.load %arg4[%c1, %c0_12] : memref<24x128xf32, #tpu.memory_space<vmem>>, vector<1x32xf32>
    %c2 = arith.constant 2 : index
    %c0_13 = arith.constant 0 : index
    %29 = vector.load %arg4[%c2, %c0_13] : memref<24x128xf32, #tpu.memory_space<vmem>>, vector<1x64xf32>
    %c3 = arith.constant 3 : index
    %c0_14 = arith.constant 0 : index
    %30 = vector.load %arg4[%c3, %c0_14] : memref<24x128xf32, #tpu.memory_space<vmem>>, vector<1x32xf32>
    %c4 = arith.constant 4 : index
    %c0_15 = arith.constant 0 : index
    %31 = vector.load %arg4[%c4, %c0_15] : memref<24x128xf32, #tpu.memory_space<vmem>>, vector<1x32xf32>
    %c5 = arith.constant 5 : index
    %c0_16 = arith.constant 0 : index
    %32 = vector.load %arg4[%c5, %c0_16] : memref<24x128xf32, #tpu.memory_space<vmem>>, vector<1x32xf32>
    %c6 = arith.constant 6 : index
    %c0_17 = arith.constant 0 : index
    %33 = vector.load %arg4[%c6, %c0_17] : memref<24x128xf32, #tpu.memory_space<vmem>>, vector<1x32xf32>
    %c7 = arith.constant 7 : index
    %c0_18 = arith.constant 0 : index
    %34 = vector.load %arg4[%c7, %c0_18] : memref<24x128xf32, #tpu.memory_space<vmem>>, vector<1x32xf32>
    %c0_19 = arith.constant 0 : index
    %c0_20 = arith.constant 0 : index
    %c0_21 = arith.constant 0 : index
    %35 = vector.load %arg3[%c0_19, %c0_20, %c0_21] : memref<2x64x768xbf16, #tpu.memory_space<vmem>>, vector<1x32x96xbf16>
    %36 = vector.shape_cast %35 : vector<1x32x96xbf16> to vector<32x96xbf16>
    %c0_22 = arith.constant 0 : index
    %c0_23 = arith.constant 0 : index
    %c256 = arith.constant 256 : index
    %37 = vector.load %arg3[%c0_22, %c0_23, %c256] : memref<2x64x768xbf16, #tpu.memory_space<vmem>>, vector<1x32x64xbf16>
    %38 = vector.shape_cast %37 : vector<1x32x64xbf16> to vector<32x64xbf16>
    %c0_24 = arith.constant 0 : index
    %c0_25 = arith.constant 0 : index
    %c384 = arith.constant 384 : index
    %39 = vector.load %arg3[%c0_24, %c0_25, %c384] : memref<2x64x768xbf16, #tpu.memory_space<vmem>>, vector<1x64x32xbf16>
    %40 = vector.shape_cast %39 : vector<1x64x32xbf16> to vector<64x32xbf16>
    %41 = arith.truncf %26 : vector<8x32xf32> to vector<8x32xbf16>
    %cst_26 = arith.constant dense<0.000000e+00> : vector<8x96xf32>
    %42 = tpu.matmul %41, %36, %cst_26 {dimension_numbers = #tpu.dot_dimension_numbers<[1], [0], [0], [1], [0, 0, 1, 1], [], []>} : vector<8x32xbf16>, vector<32x96xbf16>, vector<8x96xf32> -> vector<8x96xf32>
    %43 = vector.broadcast %27 : vector<1x96xf32> to vector<8x96xf32>
    %44 = arith.addf %42, %43 : vector<8x96xf32>
    %45 = vector.extract_strided_slice %44 {offsets = [0, 0], sizes = [8, 16], strides = [1, 1]} : vector<8x96xf32> to vector<8x16xf32>
    %46 = arith.truncf %45 : vector<8x16xf32> to vector<8x16xbf16>
    %47 = vector.extract_strided_slice %44 {offsets = [0, 32], sizes = [8, 16], strides = [1, 1]} : vector<8x96xf32> to vector<8x16xf32>
    %48 = arith.truncf %47 : vector<8x16xf32> to vector<8x16xbf16>
    %49 = vector.extract_strided_slice %44 {offsets = [0, 64], sizes = [8, 16], strides = [1, 1]} : vector<8x96xf32> to vector<8x16xf32>
    %50 = arith.truncf %49 : vector<8x16xf32> to vector<8x16xbf16>
    %c0_27 = arith.constant 0 : index
    %c0_28 = arith.constant 0 : index
    %c128 = arith.constant 128 : index
    %51 = vector.load %arg3[%c0_27, %c0_28, %c128] : memref<2x64x768xbf16, #tpu.memory_space<vmem>>, vector<1x16x32xbf16>
    %52 = vector.shape_cast %51 : vector<1x16x32xbf16> to vector<16x32xbf16>
    %cst_29 = arith.constant dense<0.000000e+00> : vector<8x8xf32>
    %53 = tpu.matmul %46, %48, %cst_29 {dimension_numbers = #tpu.dot_dimension_numbers<[1], [1], [0], [0], [0, 0, 1, 0], [], []>} : vector<8x16xbf16>, vector<8x16xbf16>, vector<8x8xf32> -> vector<8x8xf32>
    %54 = vector.broadcast %2 : vector<1x8xf32> to vector<8x8xf32>
    %55 = arith.addf %53, %54 : vector<8x8xf32>
    %cst_30 = arith.constant dense<0xFF800000> : vector<8xf32>
    %56 = vector.multi_reduction <maximumf>, %55, %cst_30 [1] : vector<8x8xf32> to vector<8xf32>
    %57 = vector.shape_cast %56 : vector<8xf32> to vector<8x1xf32>
    %58 = vector.broadcast %57 : vector<8x1xf32> to vector<8x8xf32>
    %59 = arith.subf %55, %58 : vector<8x8xf32>
    %60 = math.exp %59 : vector<8x8xf32>
    %cst_31 = arith.constant dense<0.000000e+00> : vector<8xf32>
    %61 = vector.multi_reduction <add>, %60, %cst_31 [1] : vector<8x8xf32> to vector<8xf32>
    %62 = vector.shape_cast %61 : vector<8xf32> to vector<8x1xf32>
    %63 = tpu.reciprocal %62 {approx = true} : vector<8x1xf32> -> vector<8x1xf32>
    %64 = vector.broadcast %63 : vector<8x1xf32> to vector<8x8xf32>
    %65 = arith.mulf %60, %64 : vector<8x8xf32>
    %66 = arith.truncf %65 : vector<8x8xf32> to vector<8x8xbf16>
    %cst_32 = arith.constant dense<0.000000e+00> : vector<8x16xf32>
    %67 = tpu.matmul %66, %50, %cst_32 {dimension_numbers = #tpu.dot_dimension_numbers<[1], [0], [0], [1], [0, 0, 1, 1], [], []>} : vector<8x8xbf16>, vector<8x16xbf16>, vector<8x16xf32> -> vector<8x16xf32>
    %68 = arith.truncf %67 : vector<8x16xf32> to vector<8x16xbf16>
    %cst_33 = arith.constant dense<0.000000e+00> : vector<8x32xf32>
    %69 = tpu.matmul %68, %52, %cst_33 {dimension_numbers = #tpu.dot_dimension_numbers<[1], [0], [0], [1], [0, 0, 1, 1], [], []>} : vector<8x16xbf16>, vector<16x32xbf16>, vector<8x32xf32> -> vector<8x32xf32>
    %70 = vector.broadcast %28 : vector<1x32xf32> to vector<8x32xf32>
    %71 = arith.addf %70, %69 : vector<8x32xf32>
    %72 = vector.extract_strided_slice %44 {offsets = [0, 16], sizes = [8, 16], strides = [1, 1]} : vector<8x96xf32> to vector<8x16xf32>
    %73 = arith.truncf %72 : vector<8x16xf32> to vector<8x16xbf16>
    %74 = vector.extract_strided_slice %44 {offsets = [0, 48], sizes = [8, 16], strides = [1, 1]} : vector<8x96xf32> to vector<8x16xf32>
    %75 = arith.truncf %74 : vector<8x16xf32> to vector<8x16xbf16>
    %76 = vector.extract_strided_slice %44 {offsets = [0, 80], sizes = [8, 16], strides = [1, 1]} : vector<8x96xf32> to vector<8x16xf32>
    %77 = arith.truncf %76 : vector<8x16xf32> to vector<8x16xbf16>
    %c0_34 = arith.constant 0 : index
    %c16_35 = arith.constant 16 : index
    %c128_36 = arith.constant 128 : index
    %78 = vector.load %arg3[%c0_34, %c16_35, %c128_36] : memref<2x64x768xbf16, #tpu.memory_space<vmem>>, vector<1x16x32xbf16>
    %79 = vector.shape_cast %78 : vector<1x16x32xbf16> to vector<16x32xbf16>
    %cst_37 = arith.constant dense<0.000000e+00> : vector<8x8xf32>
    %80 = tpu.matmul %73, %75, %cst_37 {dimension_numbers = #tpu.dot_dimension_numbers<[1], [1], [0], [0], [0, 0, 1, 0], [], []>} : vector<8x16xbf16>, vector<8x16xbf16>, vector<8x8xf32> -> vector<8x8xf32>
    %81 = vector.broadcast %2 : vector<1x8xf32> to vector<8x8xf32>
    %82 = arith.addf %80, %81 : vector<8x8xf32>
    %cst_38 = arith.constant dense<0xFF800000> : vector<8xf32>
    %83 = vector.multi_reduction <maximumf>, %82, %cst_38 [1] : vector<8x8xf32> to vector<8xf32>
    %84 = vector.shape_cast %83 : vector<8xf32> to vector<8x1xf32>
    %85 = vector.broadcast %84 : vector<8x1xf32> to vector<8x8xf32>
    %86 = arith.subf %82, %85 : vector<8x8xf32>
    %87 = math.exp %86 : vector<8x8xf32>
    %cst_39 = arith.constant dense<0.000000e+00> : vector<8xf32>
    %88 = vector.multi_reduction <add>, %87, %cst_39 [1] : vector<8x8xf32> to vector<8xf32>
    %89 = vector.shape_cast %88 : vector<8xf32> to vector<8x1xf32>
    %90 = tpu.reciprocal %89 {approx = true} : vector<8x1xf32> -> vector<8x1xf32>
    %91 = vector.broadcast %90 : vector<8x1xf32> to vector<8x8xf32>
    %92 = arith.mulf %87, %91 : vector<8x8xf32>
    %93 = arith.truncf %92 : vector<8x8xf32> to vector<8x8xbf16>
    %cst_40 = arith.constant dense<0.000000e+00> : vector<8x16xf32>
    %94 = tpu.matmul %93, %77, %cst_40 {dimension_numbers = #tpu.dot_dimension_numbers<[1], [0], [0], [1], [0, 0, 1, 1], [], []>} : vector<8x8xbf16>, vector<8x16xbf16>, vector<8x16xf32> -> vector<8x16xf32>
    %95 = arith.truncf %94 : vector<8x16xf32> to vector<8x16xbf16>
    %cst_41 = arith.constant dense<0.000000e+00> : vector<8x32xf32>
    %96 = tpu.matmul %95, %79, %cst_41 {dimension_numbers = #tpu.dot_dimension_numbers<[1], [0], [0], [1], [0, 0, 1, 1], [], []>} : vector<8x16xbf16>, vector<16x32xbf16>, vector<8x32xf32> -> vector<8x32xf32>
    %97 = arith.addf %71, %96 : vector<8x32xf32>
    %98 = arith.addf %26, %97 : vector<8x32xf32>
    %cst_42 = arith.constant dense<0.000000e+00> : vector<8xf32>
    %99 = vector.multi_reduction <add>, %98, %cst_42 [1] : vector<8x32xf32> to vector<8xf32>
    %100 = vector.shape_cast %99 : vector<8xf32> to vector<8x1xf32>
    %cst_43 = arith.constant 3.200000e+01 : f32
    %101 = vector.broadcast %cst_43 : f32 to vector<8x1xf32>
    %102 = arith.divf %100, %101 : vector<8x1xf32>
    %103 = vector.broadcast %102 : vector<8x1xf32> to vector<8x32xf32>
    %104 = arith.subf %98, %103 : vector<8x32xf32>
    %105 = arith.mulf %104, %104 : vector<8x32xf32>
    %cst_44 = arith.constant dense<0.000000e+00> : vector<8xf32>
    %106 = vector.multi_reduction <add>, %105, %cst_44 [1] : vector<8x32xf32> to vector<8xf32>
    %107 = vector.shape_cast %106 : vector<8xf32> to vector<8x1xf32>
    %cst_45 = arith.constant 3.200000e+01 : f32
    %108 = vector.broadcast %cst_45 : f32 to vector<8x1xf32>
    %109 = arith.divf %107, %108 : vector<8x1xf32>
    %110 = vector.broadcast %102 : vector<8x1xf32> to vector<8x32xf32>
    %111 = arith.subf %98, %110 : vector<8x32xf32>
    %cst_46 = arith.constant 9.99999974E-6 : f32
    %112 = vector.broadcast %cst_46 : f32 to vector<8x1xf32>
    %113 = arith.addf %109, %112 : vector<8x1xf32>
    %114 = math.rsqrt %113 : vector<8x1xf32>
    %115 = vector.broadcast %114 : vector<8x1xf32> to vector<8x32xf32>
    %116 = arith.mulf %111, %115 : vector<8x32xf32>
    %117 = vector.broadcast %31 : vector<1x32xf32> to vector<8x32xf32>
    %118 = arith.mulf %116, %117 : vector<8x32xf32>
    %119 = vector.broadcast %32 : vector<1x32xf32> to vector<8x32xf32>
    %120 = arith.addf %118, %119 : vector<8x32xf32>
    %121 = arith.truncf %120 : vector<8x32xf32> to vector<8x32xbf16>
    %cst_47 = arith.constant dense<0.000000e+00> : vector<8x64xf32>
    %122 = tpu.matmul %121, %38, %cst_47 {dimension_numbers = #tpu.dot_dimension_numbers<[1], [0], [0], [1], [0, 0, 1, 1], [], []>} : vector<8x32xbf16>, vector<32x64xbf16>, vector<8x64xf32> -> vector<8x64xf32>
    %123 = vector.broadcast %29 : vector<1x64xf32> to vector<8x64xf32>
    %124 = arith.addf %122, %123 : vector<8x64xf32>
    %cst_48 = arith.constant 5.000000e-01 : f32
    %125 = vector.broadcast %cst_48 : f32 to vector<8x64xf32>
    %126 = arith.mulf %125, %124 : vector<8x64xf32>
    %cst_49 = arith.constant 4.471500e-02 : f32
    %127 = vector.broadcast %cst_49 : f32 to vector<8x64xf32>
    %128 = arith.mulf %127, %124 : vector<8x64xf32>
    %129 = arith.mulf %128, %124 : vector<8x64xf32>
    %130 = arith.mulf %129, %124 : vector<8x64xf32>
    %131 = arith.addf %124, %130 : vector<8x64xf32>
    %cst_50 = arith.constant 0.797884583 : f32
    %132 = vector.broadcast %cst_50 : f32 to vector<8x64xf32>
    %133 = arith.mulf %132, %131 : vector<8x64xf32>
    %134 = math.tanh %133 : vector<8x64xf32>
    %cst_51 = arith.constant 1.000000e+00 : f32
    %135 = vector.broadcast %cst_51 : f32 to vector<8x64xf32>
    %136 = arith.addf %135, %134 : vector<8x64xf32>
    %137 = arith.mulf %126, %136 : vector<8x64xf32>
    %138 = arith.truncf %137 : vector<8x64xf32> to vector<8x64xbf16>
    %cst_52 = arith.constant dense<0.000000e+00> : vector<8x32xf32>
    %139 = tpu.matmul %138, %40, %cst_52 {dimension_numbers = #tpu.dot_dimension_numbers<[1], [0], [0], [1], [0, 0, 1, 1], [], []>} : vector<8x64xbf16>, vector<64x32xbf16>, vector<8x32xf32> -> vector<8x32xf32>
    %140 = vector.broadcast %30 : vector<1x32xf32> to vector<8x32xf32>
    %141 = arith.addf %139, %140 : vector<8x32xf32>
    %142 = arith.addf %120, %141 : vector<8x32xf32>
    %cst_53 = arith.constant dense<0.000000e+00> : vector<8xf32>
    %143 = vector.multi_reduction <add>, %142, %cst_53 [1] : vector<8x32xf32> to vector<8xf32>
    %144 = vector.shape_cast %143 : vector<8xf32> to vector<8x1xf32>
    %cst_54 = arith.constant 3.200000e+01 : f32
    %145 = vector.broadcast %cst_54 : f32 to vector<8x1xf32>
    %146 = arith.divf %144, %145 : vector<8x1xf32>
    %147 = vector.broadcast %146 : vector<8x1xf32> to vector<8x32xf32>
    %148 = arith.subf %142, %147 : vector<8x32xf32>
    %149 = arith.mulf %148, %148 : vector<8x32xf32>
    %cst_55 = arith.constant dense<0.000000e+00> : vector<8xf32>
    %150 = vector.multi_reduction <add>, %149, %cst_55 [1] : vector<8x32xf32> to vector<8xf32>
    %151 = vector.shape_cast %150 : vector<8xf32> to vector<8x1xf32>
    %cst_56 = arith.constant 3.200000e+01 : f32
    %152 = vector.broadcast %cst_56 : f32 to vector<8x1xf32>
    %153 = arith.divf %151, %152 : vector<8x1xf32>
    %154 = vector.broadcast %146 : vector<8x1xf32> to vector<8x32xf32>
    %155 = arith.subf %142, %154 : vector<8x32xf32>
    %cst_57 = arith.constant 9.99999974E-6 : f32
    %156 = vector.broadcast %cst_57 : f32 to vector<8x1xf32>
    %157 = arith.addf %153, %156 : vector<8x1xf32>
    %158 = math.rsqrt %157 : vector<8x1xf32>
    %159 = vector.broadcast %158 : vector<8x1xf32> to vector<8x32xf32>
    %160 = arith.mulf %155, %159 : vector<8x32xf32>
    %161 = vector.broadcast %33 : vector<1x32xf32> to vector<8x32xf32>
    %162 = arith.mulf %160, %161 : vector<8x32xf32>
    %163 = vector.broadcast %34 : vector<1x32xf32> to vector<8x32xf32>
    %164 = arith.addf %162, %163 : vector<8x32xf32>
    %c8 = arith.constant 8 : index
    %c0_58 = arith.constant 0 : index
    %165 = vector.load %arg4[%c8, %c0_58] : memref<24x128xf32, #tpu.memory_space<vmem>>, vector<1x96xf32>
    %c9 = arith.constant 9 : index
    %c0_59 = arith.constant 0 : index
    %166 = vector.load %arg4[%c9, %c0_59] : memref<24x128xf32, #tpu.memory_space<vmem>>, vector<1x32xf32>
    %c10 = arith.constant 10 : index
    %c0_60 = arith.constant 0 : index
    %167 = vector.load %arg4[%c10, %c0_60] : memref<24x128xf32, #tpu.memory_space<vmem>>, vector<1x64xf32>
    %c11 = arith.constant 11 : index
    %c0_61 = arith.constant 0 : index
    %168 = vector.load %arg4[%c11, %c0_61] : memref<24x128xf32, #tpu.memory_space<vmem>>, vector<1x32xf32>
    %c12 = arith.constant 12 : index
    %c0_62 = arith.constant 0 : index
    %169 = vector.load %arg4[%c12, %c0_62] : memref<24x128xf32, #tpu.memory_space<vmem>>, vector<1x32xf32>
    %c13 = arith.constant 13 : index
    %c0_63 = arith.constant 0 : index
    %170 = vector.load %arg4[%c13, %c0_63] : memref<24x128xf32, #tpu.memory_space<vmem>>, vector<1x32xf32>
    %c14 = arith.constant 14 : index
    %c0_64 = arith.constant 0 : index
    %171 = vector.load %arg4[%c14, %c0_64] : memref<24x128xf32, #tpu.memory_space<vmem>>, vector<1x32xf32>
    %c15 = arith.constant 15 : index
    %c0_65 = arith.constant 0 : index
    %172 = vector.load %arg4[%c15, %c0_65] : memref<24x128xf32, #tpu.memory_space<vmem>>, vector<1x32xf32>
    %c1_66 = arith.constant 1 : index
    %c0_67 = arith.constant 0 : index
    %c0_68 = arith.constant 0 : index
    %173 = vector.load %arg3[%c1_66, %c0_67, %c0_68] : memref<2x64x768xbf16, #tpu.memory_space<vmem>>, vector<1x32x96xbf16>
    %174 = vector.shape_cast %173 : vector<1x32x96xbf16> to vector<32x96xbf16>
    %c1_69 = arith.constant 1 : index
    %c0_70 = arith.constant 0 : index
    %c256_71 = arith.constant 256 : index
    %175 = vector.load %arg3[%c1_69, %c0_70, %c256_71] : memref<2x64x768xbf16, #tpu.memory_space<vmem>>, vector<1x32x64xbf16>
    %176 = vector.shape_cast %175 : vector<1x32x64xbf16> to vector<32x64xbf16>
    %c1_72 = arith.constant 1 : index
    %c0_73 = arith.constant 0 : index
    %c384_74 = arith.constant 384 : index
    %177 = vector.load %arg3[%c1_72, %c0_73, %c384_74] : memref<2x64x768xbf16, #tpu.memory_space<vmem>>, vector<1x64x32xbf16>
    %178 = vector.shape_cast %177 : vector<1x64x32xbf16> to vector<64x32xbf16>
    %179 = arith.truncf %164 : vector<8x32xf32> to vector<8x32xbf16>
    %cst_75 = arith.constant dense<0.000000e+00> : vector<8x96xf32>
    %180 = tpu.matmul %179, %174, %cst_75 {dimension_numbers = #tpu.dot_dimension_numbers<[1], [0], [0], [1], [0, 0, 1, 1], [], []>} : vector<8x32xbf16>, vector<32x96xbf16>, vector<8x96xf32> -> vector<8x96xf32>
    %181 = vector.broadcast %165 : vector<1x96xf32> to vector<8x96xf32>
    %182 = arith.addf %180, %181 : vector<8x96xf32>
    %183 = vector.extract_strided_slice %182 {offsets = [0, 0], sizes = [8, 16], strides = [1, 1]} : vector<8x96xf32> to vector<8x16xf32>
    %184 = arith.truncf %183 : vector<8x16xf32> to vector<8x16xbf16>
    %185 = vector.extract_strided_slice %182 {offsets = [0, 32], sizes = [8, 16], strides = [1, 1]} : vector<8x96xf32> to vector<8x16xf32>
    %186 = arith.truncf %185 : vector<8x16xf32> to vector<8x16xbf16>
    %187 = vector.extract_strided_slice %182 {offsets = [0, 64], sizes = [8, 16], strides = [1, 1]} : vector<8x96xf32> to vector<8x16xf32>
    %188 = arith.truncf %187 : vector<8x16xf32> to vector<8x16xbf16>
    %c1_76 = arith.constant 1 : index
    %c0_77 = arith.constant 0 : index
    %c128_78 = arith.constant 128 : index
    %189 = vector.load %arg3[%c1_76, %c0_77, %c128_78] : memref<2x64x768xbf16, #tpu.memory_space<vmem>>, vector<1x16x32xbf16>
    %190 = vector.shape_cast %189 : vector<1x16x32xbf16> to vector<16x32xbf16>
    %cst_79 = arith.constant dense<0.000000e+00> : vector<8x8xf32>
    %191 = tpu.matmul %184, %186, %cst_79 {dimension_numbers = #tpu.dot_dimension_numbers<[1], [1], [0], [0], [0, 0, 1, 0], [], []>} : vector<8x16xbf16>, vector<8x16xbf16>, vector<8x8xf32> -> vector<8x8xf32>
    %192 = vector.broadcast %2 : vector<1x8xf32> to vector<8x8xf32>
    %193 = arith.addf %191, %192 : vector<8x8xf32>
    %cst_80 = arith.constant dense<0xFF800000> : vector<8xf32>
    %194 = vector.multi_reduction <maximumf>, %193, %cst_80 [1] : vector<8x8xf32> to vector<8xf32>
    %195 = vector.shape_cast %194 : vector<8xf32> to vector<8x1xf32>
    %196 = vector.broadcast %195 : vector<8x1xf32> to vector<8x8xf32>
    %197 = arith.subf %193, %196 : vector<8x8xf32>
    %198 = math.exp %197 : vector<8x8xf32>
    %cst_81 = arith.constant dense<0.000000e+00> : vector<8xf32>
    %199 = vector.multi_reduction <add>, %198, %cst_81 [1] : vector<8x8xf32> to vector<8xf32>
    %200 = vector.shape_cast %199 : vector<8xf32> to vector<8x1xf32>
    %201 = tpu.reciprocal %200 {approx = true} : vector<8x1xf32> -> vector<8x1xf32>
    %202 = vector.broadcast %201 : vector<8x1xf32> to vector<8x8xf32>
    %203 = arith.mulf %198, %202 : vector<8x8xf32>
    %204 = arith.truncf %203 : vector<8x8xf32> to vector<8x8xbf16>
    %cst_82 = arith.constant dense<0.000000e+00> : vector<8x16xf32>
    %205 = tpu.matmul %204, %188, %cst_82 {dimension_numbers = #tpu.dot_dimension_numbers<[1], [0], [0], [1], [0, 0, 1, 1], [], []>} : vector<8x8xbf16>, vector<8x16xbf16>, vector<8x16xf32> -> vector<8x16xf32>
    %206 = arith.truncf %205 : vector<8x16xf32> to vector<8x16xbf16>
    %cst_83 = arith.constant dense<0.000000e+00> : vector<8x32xf32>
    %207 = tpu.matmul %206, %190, %cst_83 {dimension_numbers = #tpu.dot_dimension_numbers<[1], [0], [0], [1], [0, 0, 1, 1], [], []>} : vector<8x16xbf16>, vector<16x32xbf16>, vector<8x32xf32> -> vector<8x32xf32>
    %208 = vector.broadcast %166 : vector<1x32xf32> to vector<8x32xf32>
    %209 = arith.addf %208, %207 : vector<8x32xf32>
    %210 = vector.extract_strided_slice %182 {offsets = [0, 16], sizes = [8, 16], strides = [1, 1]} : vector<8x96xf32> to vector<8x16xf32>
    %211 = arith.truncf %210 : vector<8x16xf32> to vector<8x16xbf16>
    %212 = vector.extract_strided_slice %182 {offsets = [0, 48], sizes = [8, 16], strides = [1, 1]} : vector<8x96xf32> to vector<8x16xf32>
    %213 = arith.truncf %212 : vector<8x16xf32> to vector<8x16xbf16>
    %214 = vector.extract_strided_slice %182 {offsets = [0, 80], sizes = [8, 16], strides = [1, 1]} : vector<8x96xf32> to vector<8x16xf32>
    %215 = arith.truncf %214 : vector<8x16xf32> to vector<8x16xbf16>
    %c1_84 = arith.constant 1 : index
    %c16_85 = arith.constant 16 : index
    %c128_86 = arith.constant 128 : index
    %216 = vector.load %arg3[%c1_84, %c16_85, %c128_86] : memref<2x64x768xbf16, #tpu.memory_space<vmem>>, vector<1x16x32xbf16>
    %217 = vector.shape_cast %216 : vector<1x16x32xbf16> to vector<16x32xbf16>
    %cst_87 = arith.constant dense<0.000000e+00> : vector<8x8xf32>
    %218 = tpu.matmul %211, %213, %cst_87 {dimension_numbers = #tpu.dot_dimension_numbers<[1], [1], [0], [0], [0, 0, 1, 0], [], []>} : vector<8x16xbf16>, vector<8x16xbf16>, vector<8x8xf32> -> vector<8x8xf32>
    %219 = vector.broadcast %2 : vector<1x8xf32> to vector<8x8xf32>
    %220 = arith.addf %218, %219 : vector<8x8xf32>
    %cst_88 = arith.constant dense<0xFF800000> : vector<8xf32>
    %221 = vector.multi_reduction <maximumf>, %220, %cst_88 [1] : vector<8x8xf32> to vector<8xf32>
    %222 = vector.shape_cast %221 : vector<8xf32> to vector<8x1xf32>
    %223 = vector.broadcast %222 : vector<8x1xf32> to vector<8x8xf32>
    %224 = arith.subf %220, %223 : vector<8x8xf32>
    %225 = math.exp %224 : vector<8x8xf32>
    %cst_89 = arith.constant dense<0.000000e+00> : vector<8xf32>
    %226 = vector.multi_reduction <add>, %225, %cst_89 [1] : vector<8x8xf32> to vector<8xf32>
    %227 = vector.shape_cast %226 : vector<8xf32> to vector<8x1xf32>
    %228 = tpu.reciprocal %227 {approx = true} : vector<8x1xf32> -> vector<8x1xf32>
    %229 = vector.broadcast %228 : vector<8x1xf32> to vector<8x8xf32>
    %230 = arith.mulf %225, %229 : vector<8x8xf32>
    %231 = arith.truncf %230 : vector<8x8xf32> to vector<8x8xbf16>
    %cst_90 = arith.constant dense<0.000000e+00> : vector<8x16xf32>
    %232 = tpu.matmul %231, %215, %cst_90 {dimension_numbers = #tpu.dot_dimension_numbers<[1], [0], [0], [1], [0, 0, 1, 1], [], []>} : vector<8x8xbf16>, vector<8x16xbf16>, vector<8x16xf32> -> vector<8x16xf32>
    %233 = arith.truncf %232 : vector<8x16xf32> to vector<8x16xbf16>
    %cst_91 = arith.constant dense<0.000000e+00> : vector<8x32xf32>
    %234 = tpu.matmul %233, %217, %cst_91 {dimension_numbers = #tpu.dot_dimension_numbers<[1], [0], [0], [1], [0, 0, 1, 1], [], []>} : vector<8x16xbf16>, vector<16x32xbf16>, vector<8x32xf32> -> vector<8x32xf32>
    %235 = arith.addf %209, %234 : vector<8x32xf32>
    %236 = arith.addf %164, %235 : vector<8x32xf32>
    %cst_92 = arith.constant dense<0.000000e+00> : vector<8xf32>
    %237 = vector.multi_reduction <add>, %236, %cst_92 [1] : vector<8x32xf32> to vector<8xf32>
    %238 = vector.shape_cast %237 : vector<8xf32> to vector<8x1xf32>
    %cst_93 = arith.constant 3.200000e+01 : f32
    %239 = vector.broadcast %cst_93 : f32 to vector<8x1xf32>
    %240 = arith.divf %238, %239 : vector<8x1xf32>
    %241 = vector.broadcast %240 : vector<8x1xf32> to vector<8x32xf32>
    %242 = arith.subf %236, %241 : vector<8x32xf32>
    %243 = arith.mulf %242, %242 : vector<8x32xf32>
    %cst_94 = arith.constant dense<0.000000e+00> : vector<8xf32>
    %244 = vector.multi_reduction <add>, %243, %cst_94 [1] : vector<8x32xf32> to vector<8xf32>
    %245 = vector.shape_cast %244 : vector<8xf32> to vector<8x1xf32>
    %cst_95 = arith.constant 3.200000e+01 : f32
    %246 = vector.broadcast %cst_95 : f32 to vector<8x1xf32>
    %247 = arith.divf %245, %246 : vector<8x1xf32>
    %248 = vector.broadcast %240 : vector<8x1xf32> to vector<8x32xf32>
    %249 = arith.subf %236, %248 : vector<8x32xf32>
    %cst_96 = arith.constant 9.99999974E-6 : f32
    %250 = vector.broadcast %cst_96 : f32 to vector<8x1xf32>
    %251 = arith.addf %247, %250 : vector<8x1xf32>
    %252 = math.rsqrt %251 : vector<8x1xf32>
    %253 = vector.broadcast %252 : vector<8x1xf32> to vector<8x32xf32>
    %254 = arith.mulf %249, %253 : vector<8x32xf32>
    %255 = vector.broadcast %169 : vector<1x32xf32> to vector<8x32xf32>
    %256 = arith.mulf %254, %255 : vector<8x32xf32>
    %257 = vector.broadcast %170 : vector<1x32xf32> to vector<8x32xf32>
    %258 = arith.addf %256, %257 : vector<8x32xf32>
    %259 = arith.truncf %258 : vector<8x32xf32> to vector<8x32xbf16>
    %cst_97 = arith.constant dense<0.000000e+00> : vector<8x64xf32>
    %260 = tpu.matmul %259, %176, %cst_97 {dimension_numbers = #tpu.dot_dimension_numbers<[1], [0], [0], [1], [0, 0, 1, 1], [], []>} : vector<8x32xbf16>, vector<32x64xbf16>, vector<8x64xf32> -> vector<8x64xf32>
    %261 = vector.broadcast %167 : vector<1x64xf32> to vector<8x64xf32>
    %262 = arith.addf %260, %261 : vector<8x64xf32>
    %cst_98 = arith.constant 5.000000e-01 : f32
    %263 = vector.broadcast %cst_98 : f32 to vector<8x64xf32>
    %264 = arith.mulf %263, %262 : vector<8x64xf32>
    %cst_99 = arith.constant 4.471500e-02 : f32
    %265 = vector.broadcast %cst_99 : f32 to vector<8x64xf32>
    %266 = arith.mulf %265, %262 : vector<8x64xf32>
    %267 = arith.mulf %266, %262 : vector<8x64xf32>
    %268 = arith.mulf %267, %262 : vector<8x64xf32>
    %269 = arith.addf %262, %268 : vector<8x64xf32>
    %cst_100 = arith.constant 0.797884583 : f32
    %270 = vector.broadcast %cst_100 : f32 to vector<8x64xf32>
    %271 = arith.mulf %270, %269 : vector<8x64xf32>
    %272 = math.tanh %271 : vector<8x64xf32>
    %cst_101 = arith.constant 1.000000e+00 : f32
    %273 = vector.broadcast %cst_101 : f32 to vector<8x64xf32>
    %274 = arith.addf %273, %272 : vector<8x64xf32>
    %275 = arith.mulf %264, %274 : vector<8x64xf32>
    %276 = arith.truncf %275 : vector<8x64xf32> to vector<8x64xbf16>
    %cst_102 = arith.constant dense<0.000000e+00> : vector<8x32xf32>
    %277 = tpu.matmul %276, %178, %cst_102 {dimension_numbers = #tpu.dot_dimension_numbers<[1], [0], [0], [1], [0, 0, 1, 1], [], []>} : vector<8x64xbf16>, vector<64x32xbf16>, vector<8x32xf32> -> vector<8x32xf32>
    %278 = vector.broadcast %168 : vector<1x32xf32> to vector<8x32xf32>
    %279 = arith.addf %277, %278 : vector<8x32xf32>
    %280 = arith.addf %258, %279 : vector<8x32xf32>
    %cst_103 = arith.constant dense<0.000000e+00> : vector<8xf32>
    %281 = vector.multi_reduction <add>, %280, %cst_103 [1] : vector<8x32xf32> to vector<8xf32>
    %282 = vector.shape_cast %281 : vector<8xf32> to vector<8x1xf32>
    %cst_104 = arith.constant 3.200000e+01 : f32
    %283 = vector.broadcast %cst_104 : f32 to vector<8x1xf32>
    %284 = arith.divf %282, %283 : vector<8x1xf32>
    %285 = vector.broadcast %284 : vector<8x1xf32> to vector<8x32xf32>
    %286 = arith.subf %280, %285 : vector<8x32xf32>
    %287 = arith.mulf %286, %286 : vector<8x32xf32>
    %cst_105 = arith.constant dense<0.000000e+00> : vector<8xf32>
    %288 = vector.multi_reduction <add>, %287, %cst_105 [1] : vector<8x32xf32> to vector<8xf32>
    %289 = vector.shape_cast %288 : vector<8xf32> to vector<8x1xf32>
    %cst_106 = arith.constant 3.200000e+01 : f32
    %290 = vector.broadcast %cst_106 : f32 to vector<8x1xf32>
    %291 = arith.divf %289, %290 : vector<8x1xf32>
    %292 = vector.broadcast %284 : vector<8x1xf32> to vector<8x32xf32>
    %293 = arith.subf %280, %292 : vector<8x32xf32>
    %cst_107 = arith.constant 9.99999974E-6 : f32
    %294 = vector.broadcast %cst_107 : f32 to vector<8x1xf32>
    %295 = arith.addf %291, %294 : vector<8x1xf32>
    %296 = math.rsqrt %295 : vector<8x1xf32>
    %297 = vector.broadcast %296 : vector<8x1xf32> to vector<8x32xf32>
    %298 = arith.mulf %293, %297 : vector<8x32xf32>
    %299 = vector.broadcast %171 : vector<1x32xf32> to vector<8x32xf32>
    %300 = arith.mulf %298, %299 : vector<8x32xf32>
    %301 = vector.broadcast %172 : vector<1x32xf32> to vector<8x32xf32>
    %302 = arith.addf %300, %301 : vector<8x32xf32>
    %c0_108 = arith.constant 0 : index
    %c0_109 = arith.constant 0 : index
    %c512 = arith.constant 512 : index
    %303 = vector.load %arg3[%c0_108, %c0_109, %c512] : memref<2x64x768xbf16, #tpu.memory_space<vmem>>, vector<1x32x32xbf16>
    %304 = vector.shape_cast %303 : vector<1x32x32xbf16> to vector<32x32xbf16>
    %c0_110 = arith.constant 0 : index
    %c0_111 = arith.constant 0 : index
    %c640 = arith.constant 640 : index
    %305 = vector.load %arg3[%c0_110, %c0_111, %c640] : memref<2x64x768xbf16, #tpu.memory_space<vmem>>, vector<1x32x128xbf16>
    %306 = vector.shape_cast %305 : vector<1x32x128xbf16> to vector<32x128xbf16>
    %c18 = arith.constant 18 : index
    %c0_112 = arith.constant 0 : index
    %307 = vector.load %arg4[%c18, %c0_112] : memref<24x128xf32, #tpu.memory_space<vmem>>, vector<1x32xf32>
    %c19 = arith.constant 19 : index
    %c0_113 = arith.constant 0 : index
    %308 = vector.load %arg4[%c19, %c0_113] : memref<24x128xf32, #tpu.memory_space<vmem>>, vector<1x128xf32>
    %309 = arith.truncf %302 : vector<8x32xf32> to vector<8x32xbf16>
    %cst_114 = arith.constant dense<0.000000e+00> : vector<8x32xf32>
    %310 = tpu.matmul %309, %304, %cst_114 {dimension_numbers = #tpu.dot_dimension_numbers<[1], [0], [0], [1], [0, 0, 1, 1], [], []>} : vector<8x32xbf16>, vector<32x32xbf16>, vector<8x32xf32> -> vector<8x32xf32>
    %311 = vector.broadcast %307 : vector<1x32xf32> to vector<8x32xf32>
    %312 = arith.addf %310, %311 : vector<8x32xf32>
    %313 = math.tanh %312 : vector<8x32xf32>
    %314 = arith.truncf %313 : vector<8x32xf32> to vector<8x32xbf16>
    %cst_115 = arith.constant dense<0.000000e+00> : vector<8x128xf32>
    %315 = tpu.matmul %314, %306, %cst_115 {dimension_numbers = #tpu.dot_dimension_numbers<[1], [0], [0], [1], [0, 0, 1, 1], [], []>} : vector<8x32xbf16>, vector<32x128xbf16>, vector<8x128xf32> -> vector<8x128xf32>
    %316 = vector.broadcast %308 : vector<1x128xf32> to vector<8x128xf32>
    %317 = arith.addf %315, %316 : vector<8x128xf32>
    %c0_116 = arith.constant 0 : index
    %c0_117 = arith.constant 0 : index
    %318 = vector.load %arg5[%c0_116, %c0_117] : memref<8x128xf32, #tpu.memory_space<vmem>>, vector<8x128xf32>
    tpu.vector_store %arg5[%c0_116, %c0_117], %317 {strides = array<i32>} : memref<8x128xf32, #tpu.memory_space<vmem>>, vector<8x128xf32>,
    return
  }
  func.func @transform_0(%arg0: i32) -> (i32, i32) {
    %c0_i32 = arith.constant 0 : i32
    %c0_i32_0 = arith.constant 0 : i32
    return %arg0, %c0_i32 : i32, i32
  }
  func.func @transform_1(%arg0: i32) -> (i32, i32, i32) {
    %c0_i32 = arith.constant 0 : i32
    %c0_i32_0 = arith.constant 0 : i32
    %c0_i32_1 = arith.constant 0 : i32
    return %arg0, %c0_i32, %c0_i32_0 : i32, i32, i32
  }
  func.func @transform_2(%arg0: i32) -> (i32, i32, i32) {
    %c0_i32 = arith.constant 0 : i32
    %c0_i32_0 = arith.constant 0 : i32
    %c0_i32_1 = arith.constant 0 : i32
    %c0_i32_2 = arith.constant 0 : i32
    return %c0_i32, %c0_i32_0, %c0_i32_1 : i32, i32, i32
  }
  func.func @transform_3(%arg0: i32) -> (i32, i32) {
    %c0_i32 = arith.constant 0 : i32
    %c0_i32_0 = arith.constant 0 : i32
    %c0_i32_1 = arith.constant 0 : i32
    return %c0_i32, %c0_i32_0 : i32, i32
  }
  func.func @transform_4(%arg0: i32) -> (i32, i32) {
    %c0_i32 = arith.constant 0 : i32
    %c0_i32_0 = arith.constant 0 : i32
    return %arg0, %c0_i32 : i32, i32
  }
}

</mosaic_0001>

<llo_original>
// kernel: tpu_custom_call.1
$region0: #{tpu_custom_call.1}
  #allocation0 [shape = 'u32[]', space=smem, size = 0x4, offset = 0x4, fixed_abs, tag = 'smem constant byte address 0x4 - core index']
  #allocation1 [shape = 'u32[144,128]{1,0:T(1,128)}', space=vmem, size = 0x12000, scoped, tag = 'internal scratch']
  %s0 = inlined_call_operand.hbm [shape: f32[16,32], index: 0, kind: input, shape index: {}]
  %s1 = inlined_call_operand.vmem [shape: f32[2,1,8], index: 1, kind: input, shape index: {}]
  %s2 = inlined_call_operand.hbm [shape: bf16[2,64,768], index: 2, kind: input, shape index: {}]
  %s3 = inlined_call_operand.hbm [shape: f32[24,128], index: 3, kind: input, shape index: {}]
  %s4 = inlined_call_operand.hbm [shape: f32[16,128], index: 4, kind: output, shape index: {}]
  %s5 = sld [smem:[#allocation0]]
  $region61: #{tpu_custom_call.1} parent=0
    _
  %s7 = ssub.s32 1, %s5
  %s8 = scalar_select 0, %s7, %s5
  $region1: #{tpu_custom_call.1} parent=0
    #allocation2 [shape = 'u8[8192]{0}', space=vmem, size = 0x2000, scoped, tag = 'input window, operand 0']
    #allocation3 [shape = 's32[2]{0}', space=sflag, size = 0x8, scoped, tag = 'scoped memory for tpu_custom_call.1']
    #allocation4 [shape = 's32[2]{0}', space=sflag, size = 0x8, scoped, tag = 'scoped memory for tpu_custom_call.1']
    #allocation5 [shape = 'u8[196608]{0}', space=vmem, size = 0x30000, scoped, tag = 'input window, operand 2, single buffered']
    #allocation6 [shape = 's32[1]{0}', space=sflag, size = 0x4, scoped, tag = 'scoped memory for tpu_custom_call.1']
    #allocation7 [shape = 'u8[12288]{0}', space=vmem, size = 0x3000, scoped, tag = 'input window, operand 3, single buffered']
    #allocation8 [shape = 'u8[8192]{0}', space=vmem, size = 0x2000, scoped, tag = 'output window, operand 0']
    %9 = vsyncpa [#allocation3], 0
    %s10 = scalar_lea.sflag [#allocation3], 1
    %11 = vsyncpa %s10, 0
    %12 = vsyncpa [#allocation6], 0
    %13 = vsyncpa [#allocation4], 0
    %s14 = scalar_lea.sflag [#allocation4], 1
    %15 = vsyncpa %s14, 0
    loop: start=0, step=1, limit=4
    $region2: #{tpu_custom_call.1} parent=1 // loop_pre_header
      _
    $region3: #{tpu_custom_call.1} parent=1 // loop_header
      %s17 = sphi 0, %s21
      %p18 = scmp.ge.s32.totalorder %s17, 4
      %s27 = sphi 0, %s29
      %s30 = sphi 0, %s27
      %s31 = sphi 0, %s30
      %s47 = sphi 0, %s31
      %s53 = sphi 0, %s55
      %s56 = sphi 0, %s53
      %s57 = sphi 0, %s56
      %s73 = sphi 0, %s57
      %s77 = sphi 0, %s77
      %s79 = sphi 0, %s77
      %s80 = sphi 0, %s79
      %s94 = sphi 0, %s80
      %s98 = sphi 0, %s98
      %s100 = sphi 0, %s98
      %s101 = sphi 0, %s100
      %s115 = sphi 0, %s101
      %s121 = sphi 0, %s123
      %s124 = sphi 0, %s121
      %s125 = sphi 0, %s124
      %s141 = sphi 0, %s125
    $region4: #{tpu_custom_call.1} parent=1 // loop_header_branch
      %20 = sbr.rel (%p18) target = $region8
    $region5: #{tpu_custom_call.1} parent=1 // loop_body
      %s22 = ssub.s32 %s17, 1
      %s23 = ssub.s32 %s17, 2
      %s24 = sadd.s32 %s17, 1
      %s25 = ssub.s32 %s17, %s24
      %p26 = scmp.eq.s32.totalorder %s25, 0
      %s28 = sadd.s32 %s27, 1
      %s29 = scalar_select %p26, %s27, %s28
      %p32 = pneg %p26
      %p33 = scmp.eq.s32.totalorder %s17, 1
      %p34 = por %p32, %p33
      %p35 = scmp.ne.s32.totalorder %s27, %s30
      %p36 = scmp.eq.s32.totalorder %s17, 0
      %p37 = por %p35, %p36
      %p38 = scmp.ne.s32.totalorder %s27, %s30
      %p39 = scmp.eq.s32.totalorder %s22, 1
      %p40 = por %p38, %p39
      %p41 = scmp.ne.s32.totalorder %s30, %s31
      %p42 = scmp.eq.s32.totalorder %s22, 0
      %p43 = por %p41, %p42
      %p44 = scmp.ne.s32.totalorder %s30, %s31
      %p45 = scmp.eq.s32.totalorder %s23, 1
      %p46 = por %p44, %p45
      %p48 = scmp.ne.s32.totalorder %s31, %s47
      %p49 = scmp.eq.s32.totalorder %s23, 0
      %p50 = por %p48, %p49
      %s51 = ssub.s32 %s17, %s24
      %p52 = scmp.eq.s32.totalorder %s51, 0
      %s54 = sadd.s32 %s53, 1
      %s55 = scalar_select %p52, %s53, %s54
      %p58 = pneg %p52
      %p59 = scmp.eq.s32.totalorder %s17, 1
      %p60 = por %p58, %p59
      %p61 = scmp.ne.s32.totalorder %s53, %s56
      %p62 = scmp.eq.s32.totalorder %s17, 0
      %p63 = por %p61, %p62
      %p64 = scmp.ne.s32.totalorder %s53, %s56
      %p65 = scmp.eq.s32.totalorder %s22, 1
      %p66 = por %p64, %p65
      %p67 = scmp.ne.s32.totalorder %s56, %s57
      %p68 = scmp.eq.s32.totalorder %s22, 0
      %p69 = por %p67, %p68
      %p70 = scmp.ne.s32.totalorder %s56, %s57
      %p71 = scmp.eq.s32.totalorder %s23, 1
      %p72 = por %p70, %p71
      %p74 = scmp.ne.s32.totalorder %s57, %s73
      %p75 = scmp.eq.s32.totalorder %s23, 0
      %p76 = por %p74, %p75
      %s78 = sadd.s32 %s77, 1
      %p81 = scmp.eq.s32.totalorder %s17, 1
      %p82 = scmp.ne.s32.totalorder %s77, %s79
      %p83 = scmp.eq.s32.totalorder %s17, 0
      %p84 = por %p82, %p83
      %p85 = scmp.ne.s32.totalorder %s77, %s79
      %p86 = scmp.eq.s32.totalorder %s22, 1
      %p87 = por %p85, %p86
      %p88 = scmp.ne.s32.totalorder %s79, %s80
      %p89 = scmp.eq.s32.totalorder %s22, 0
      %p90 = por %p88, %p89
      %p91 = scmp.ne.s32.totalorder %s79, %s80
      %p92 = scmp.eq.s32.totalorder %s23, 1
      %p93 = por %p91, %p92
      %p95 = scmp.ne.s32.totalorder %s80, %s94
      %p96 = scmp.eq.s32.totalorder %s23, 0
      %p97 = por %p95, %p96
      %s99 = sadd.s32 %s98, 1
      %p102 = scmp.eq.s32.totalorder %s17, 1
      %p103 = scmp.ne.s32.totalorder %s98, %s100
      %p104 = scmp.eq.s32.totalorder %s17, 0
      %p105 = por %p103, %p104
      %p106 = scmp.ne.s32.totalorder %s98, %s100
      %p107 = scmp.eq.s32.totalorder %s22, 1
      %p108 = por %p106, %p107
      %p109 = scmp.ne.s32.totalorder %s100, %s101
      %p110 = scmp.eq.s32.totalorder %s22, 0
      %p111 = por %p109, %p110
      %p112 = scmp.ne.s32.totalorder %s100, %s101
      %p113 = scmp.eq.s32.totalorder %s23, 1
      %p114 = por %p112, %p113
      %p116 = scmp.ne.s32.totalorder %s101, %s115
      %p117 = scmp.eq.s32.totalorder %s23, 0
      %p118 = por %p116, %p117
      %s119 = ssub.s32 %s17, %s24
      %p120 = scmp.eq.s32.totalorder %s119, 0
      %s122 = sadd.s32 %s121, 1
      %s123 = scalar_select %p120, %s121, %s122
      %p126 = pneg %p120
      %p127 = scmp.eq.s32.totalorder %s17, 1
      %p128 = por %p126, %p127
      %p129 = scmp.ne.s32.totalorder %s121, %s124
      %p130 = scmp.eq.s32.totalorder %s17, 0
      %p131 = por %p129, %p130
      %p132 = scmp.ne.s32.totalorder %s121, %s124
      %p133 = scmp.eq.s32.totalorder %s22, 1
      %p134 = por %p132, %p133
      %p135 = scmp.ne.s32.totalorder %s124, %s125
      %p136 = scmp.eq.s32.totalorder %s22, 0
      %p137 = por %p135, %p136
      %p138 = scmp.ne.s32.totalorder %s124, %s125
      %p139 = scmp.eq.s32.totalorder %s23, 1
      %p140 = por %p138, %p139
      %p142 = scmp.ne.s32.totalorder %s125, %s141
      %p143 = scmp.eq.s32.totalorder %s23, 0
      %p144 = por %p142, %p143
      %p145 = scmp.le.s32.totalorder 1, %s17
      %p146 = scmp.lt.s32.totalorder %s17, 3
      %p147 = pnand %p145, %p146
      %p148 = pneg %p147
      // Predicated region
      $region9: #{tpu_custom_call.1} parent=5 // pred_check
        _
      $region10: #{tpu_custom_call.1} parent=5 // pred_check_branch
        %150 = sbr.rel (%p147) target = $region12
      $region11: #{tpu_custom_call.1} parent=5 // pred_region
        %s151 = ssub.s32 %s17, 1
        // Predicated region
        $region13: #{tpu_custom_call.1} parent=11 // pred_check
          %p152 = pneg %p90
        $region14: #{tpu_custom_call.1} parent=11 // pred_check_branch
          %154 = sbr.rel (%p152) target = $region16
        $region15: #{tpu_custom_call.1} parent=11 // pred_region
          %s156 = ssub.s32 6144, 6144
          %157 = vsyncadd [#allocation6], %s156
          %s158 = sshll.u32 [#allocation5], 4
          %s159 = int_to_ptr.vmem [resolvable:$true] %s158
          %164 = dma.hbm_to_vmem [thread:$0]  %s2, 6144, %s159, [#allocation6], 384, 384, 24
        $region16: #{tpu_custom_call.1} parent=11 // pred_fallthru
          _
        // Predicated region
        $region17: #{tpu_custom_call.1} parent=11 // pred_check
          %p165 = pneg %p111
        $region18: #{tpu_custom_call.1} parent=11 // pred_check_branch
          %167 = sbr.rel (%p165) target = $region20
        $region19: #{tpu_custom_call.1} parent=11 // pred_region
          %s169 = ssub.s32 384, 384
          %170 = vsyncadd [#allocation6], %s169
          %s171 = sshll.u32 [#allocation7], 4
          %s172 = int_to_ptr.vmem [resolvable:$true] %s171
          %177 = dma.hbm_to_vmem [thread:$0]  %s3, 384, %s172, [#allocation6], 128, 128, 8
        $region20: #{tpu_custom_call.1} parent=11 // pred_fallthru
          _
      $region12: #{tpu_custom_call.1} parent=5 // pred_fallthru
        _
      %p178 = scmp.lt.s32.totalorder %s17, 2
      // Predicated region
      $region21: #{tpu_custom_call.1} parent=5 // pred_check
        %p179 = pneg %p178
      $region22: #{tpu_custom_call.1} parent=5 // pred_check_branch
        %181 = sbr.rel (%p179) target = $region24
      $region23: #{tpu_custom_call.1} parent=5 // pred_region
        // Predicated region
        $region25: #{tpu_custom_call.1} parent=23 // pred_check
          %p182 = pneg %p37
        $region26: #{tpu_custom_call.1} parent=23 // pred_check_branch
          %184 = sbr.rel (%p182) target = $region28
        $region27: #{tpu_custom_call.1} parent=23 // pred_region
          %s185 = sand.u32 %s27, 1
          %s186 = scalar_lea.sflag [#allocation3], %s185
          %s187 = sand.u32 %s27, 1
          %s188 = smul.addr %s187, 8
          %s189 = scalar_lea.vmem [#allocation2], %s188
          %s191 = ssub.s32 128, 128
          %192 = vsyncadd %s186, %s191
          %s193 = smul.addr %s17, 128
          %s194 = scalar_lea.hbm %s0, %s193
          %s196 = sshll.u32 %s189, 4
          %s197 = int_to_ptr.vmem [resolvable:$true] %s196
          %199 = dma.hbm_to_vmem [thread:$0]  %s194, 128, %s197, %s186
        $region28: #{tpu_custom_call.1} parent=23 // pred_fallthru
          _
        // Predicated region
        $region29: #{tpu_custom_call.1} parent=23 // pred_check
          %p200 = pneg %p63
        $region30: #{tpu_custom_call.1} parent=23 // pred_check_branch
          %202 = sbr.rel (%p200) target = $region32
        $region31: #{tpu_custom_call.1} parent=23 // pred_region
          %p203 = scmp.lt.s32.totalorder %s17, 1
          %s204 = scalar_select %p203, %s17, 1
          %s205 = scalar_lea.vmem %s1, %s204
        $region32: #{tpu_custom_call.1} parent=23 // pred_fallthru
          _
      $region24: #{tpu_custom_call.1} parent=5 // pred_fallthru
        _
      %p206 = scmp.le.s32.totalorder 1, %s17
      %p207 = scmp.lt.s32.totalorder %s17, 3
      %p208 = pnand %p206, %p207
      %p209 = pneg %p208
      // Predicated region
      $region33: #{tpu_custom_call.1} parent=5 // pred_check
        _
      $region34: #{tpu_custom_call.1} parent=5 // pred_check_branch
        %211 = sbr.rel (%p208) target = $region36
      $region35: #{tpu_custom_call.1} parent=5 // pred_region
        %s212 = ssub.s32 %s17, 1
        %s213 = sand.u32 %s30, 1
        %s214 = scalar_lea.sflag [#allocation3], %s213
        %s215 = sand.u32 %s30, 1
        %s216 = smul.addr %s215, 8
        %s217 = scalar_lea.vmem [#allocation2], %s216
        // Predicated region
        $region37: #{tpu_custom_call.1} parent=35 // pred_check
          %p218 = pneg %p43
        $region38: #{tpu_custom_call.1} parent=35 // pred_check_branch
          %220 = sbr.rel (%p218) target = $region40
        $region39: #{tpu_custom_call.1} parent=35 // pred_region
          %221 = dma.done %s214, 128
        $region40: #{tpu_custom_call.1} parent=35 // pred_fallthru
          _
        // Predicated region
        $region41: #{tpu_custom_call.1} parent=35 // pred_check
          %p222 = pneg %p90
        $region42: #{tpu_custom_call.1} parent=35 // pred_check_branch
          %224 = sbr.rel (%p222) target = $region44
        $region43: #{tpu_custom_call.1} parent=35 // pred_region
          %225 = dma.done [#allocation6], 6144
        $region44: #{tpu_custom_call.1} parent=35 // pred_fallthru
          _
        // Predicated region
        $region45: #{tpu_custom_call.1} parent=35 // pred_check
          %p226 = pneg %p111
        $region46: #{tpu_custom_call.1} parent=35 // pred_check_branch
          %228 = sbr.rel (%p226) target = $region48
        $region47: #{tpu_custom_call.1} parent=35 // pred_region
          %229 = dma.done [#allocation6], 384
        $region48: #{tpu_custom_call.1} parent=35 // pred_fallthru
          _
        %s230 = sand.u32 %s30, 1
        %s231 = scalar_lea.sflag [#allocation3], %s230
        %s232 = sand.u32 %s30, 1
        %s233 = smul.addr %s232, 8
        %s234 = scalar_lea.vmem [#allocation2], %s233
        %p235 = pneg %p43
        %p236 = pneg %p40
        %p237 = scmp.lt.s32.totalorder %s22, 1
        %s238 = scalar_select %p237, %s22, 1
        %s239 = scalar_lea.vmem %s1, %s238
        %p240 = pneg %p69
        %p241 = pneg %p66
        %p242 = pneg %p90
        %p243 = pneg %p87
        %p244 = pneg %p111
        %p245 = pneg %p108
        %p246 = pneg %p137
        %p247 = pneg %p134
        %s248 = sand.u32 %s124, 1
        %s249 = scalar_lea.sflag [#allocation4], %s248
        %s250 = sand.u32 %s124, 1
        %s251 = smul.addr %s250, 8
        %s252 = scalar_lea.vmem [#allocation8], %s251
        %p253 = scmp.lt.s32.totalorder %s22, 1
        %s254 = scalar_select %p253, %s22, 1
        %s255 = scalar_lea.vmem %s1, %s254
        %v257 = vld [vmem:[%s217] sm:$0xff]
        %v258 = vld [vmem:[%s255] sm:$0x1]
        %v259 = vld [vmem:[#allocation7 + $0x10] sm:$0x1]
        %v260 = vld [vmem:[#allocation7 + $0x11] sm:$0x1]
        %vm261 = vcmask 261120
        %v262 = vsel %vm261, %v257, 0.0
        %263 = vadd.xlane.f32.xlu0 %v262
        %v264 = vpop.xlane.xlu0 %263
        %v265 = vrcp.pop 32.0
        %v266 = vmul.f32 %v264, %v265
        %v267 = vsub.f32 %v257, %v266
        %v268 = vmul.f32 %v267, %v267
        %v269 = vsel %vm261, %v268, 0.0
        %270 = vadd.xlane.f32.xlu0 %v269
        %v271 = vpop.xlane.xlu0 %270
        %v272 = vmul.f32 %v271, %v265
        %v273 = vadd.f32 %v272, 1e-05
        %v274 = vrsqrt.pop %v273
        %v275 = vmul.f32 %v267, %v274
        %v276 = vlaneseq
        %v277 = vshrl.u32 %v276, 7
        %v278 = vsub.s32 0, %v277
        %v279 = vrot.slane %v259, %v278
        %v280 = vmul.f32 %v275, %v279
        %v281 = vlaneseq
        %v282 = vshrl.u32 %v281, 7
        %v283 = vsub.s32 0, %v282
        %v284 = vrot.slane %v260, %v283
        %v285 = vadd.f32 %v280, %v284
        %v286 = vld [vmem:[#allocation7] sm:$0x1]
        %v287 = vld [vmem:[#allocation7 + $0x1] sm:$0x1]
        %v288 = vld [vmem:[#allocation7 + $0x2] sm:$0x1]
        %v289 = vld [vmem:[#allocation7 + $0x3] sm:$0x1]
        %v290 = vld [vmem:[#allocation7 + $0x4] sm:$0x1]
        %v291 = vld [vmem:[#allocation7 + $0x5] sm:$0x1]
        %v292 = vld [vmem:[#allocation7 + $0x6] sm:$0x1]
        %v293 = vld [vmem:[#allocation7 + $0x7] sm:$0x1]
        %v294 = vld [vmem:[#allocation5] sm:$0xf]
        %v295 = vld [vmem:[#allocation5 + $0x18] sm:$0xf]
        %v296 = vld [vmem:[#allocation5 + $0x30] sm:$0xf]
        %v297 = vld [vmem:[#allocation5 + $0x48] sm:$0xf]
        %v298 = vld [vmem:[#allocation5 + $0x8] sm:$0xf]
        %v299 = vld [vmem:[#allocation5 + $0x20] sm:$0xf]
        %v300 = vld [vmem:[#allocation5 + $0x38] sm:$0xf]
        %v301 = vld [vmem:[#allocation5 + $0x50] sm:$0xf]
        %v302 = vld [vmem:[#allocation5 + $0xc] sm:$0xf]
        %v303 = vld [vmem:[#allocation5 + $0x24] sm:$0xf]
        %v304 = vld [vmem:[#allocation5 + $0x3c] sm:$0xf]
        %v305 = vld [vmem:[#allocation5 + $0x54] sm:$0xf]
        %v306 = vld [vmem:[#allocation5 + $0x6c] sm:$0xf]
        %v307 = vld [vmem:[#allocation5 + $0x84] sm:$0xf]
        %v308 = vld [vmem:[#allocation5 + $0x9c] sm:$0xf]
        %v309 = vld [vmem:[#allocation5 + $0xb4] sm:$0xf]
        %v310 = vpack.c.bf16 %v285, %v285
        %v311 = vlaneseq
        %v312 = vshrl.u32 %v311, 7
        %v313 = vsub.s32 0, %v312
        %v314 = vrot.slane %v286, %v313
        %v319 = vunpack.c.l.b16 %v294
        %v320 = vunpack.c.l.b16 %v295
        %v321 = vunpack.c.l.b16 %v296
        %v322 = vunpack.c.l.b16 %v297
        %v323 = vpack.c.b16 %v320, %v319
        %v324 = vpack.c.b16 %v322, %v321
        %v328 = vsel %vm261, %v310, 0
        %330 = vmatprep.subr.bf16.mxu0 0
        %331 = vmatpush1.bf16.msra.mxu0 %v323
        %332 = vmatprep.subr.bf16.mxu0 0
        %333 = vmatpush1.bf16.msra.mxu0 %v324
        %334 = vmatprep.subr.bf16.mxu0 0
        %335 = vmatpush1.bf16.msra.mxu0 0
        %336 = vmatprep.subr.bf16.mxu0 0
        %337 = vmatpush1.bf16.msra.mxu0 0
        %338 = vmatprep.subr.bf16.mxu0 0
        %339 = vmatpush1.bf16.msra.mxu0 0
        %340 = vmatprep.subr.bf16.mxu0 0
        %341 = vmatpush1.bf16.msra.mxu0 0
        %342 = vmatprep.subr.bf16.mxu0 0
        %343 = vmatpush1.bf16.msra.mxu0 0
        %344 = vmatprep.subr.bf16.mxu0 0
        %345 = vmatpush1.bf16.msra.mxu0 0
        %346 = vmatprep.subr.bf16.mxu0 0
        %347 = vmatpush1.bf16.msra.mxu0 0
        %348 = vmatprep.subr.bf16.mxu0 0
        %349 = vmatpush1.bf16.msra.mxu0 0
        %350 = vmatprep.subr.bf16.mxu0 0
        %351 = vmatpush1.bf16.msra.mxu0 0
        %352 = vmatprep.subr.bf16.mxu0 0
        %353 = vmatpush1.bf16.msra.mxu0 0
        %354 = vmatprep.subr.bf16.mxu0 0
        %355 = vmatpush1.bf16.msra.mxu0 0
        %356 = vmatprep.subr.bf16.mxu0 0
        %357 = vmatpush1.bf16.msra.mxu0 0
        %358 = vmatprep.subr.bf16.mxu0 0
        %359 = vmatpush1.bf16.msra.mxu0 0
        %360 = vmatprep.subr.bf16.mxu0 0
        %361 = vmatpush1.bf16.msra.mxu0 0
        %362 = vmatprep.mubr.bf16.mxu0 0
        %363 = vmatmul.mubr.bf16.gmra.mrb[0].mxu0 %v328
        %v364 = vpop.f32.mrb[0].mxu0
        %v365 = vadd.f32 %v314, %v364
        %v366 = vpop.f32.mrb[0].mxu0
        %v367 = vpop.f32.mrb[0].mxu0
        %v368 = vpop.f32.mrb[0].mxu0
        %369 = vdwg.mxu0
        %v370 = vpack.c.bf16 %v365, %v365
        %v371 = vld [vmem:[#allocation5 + $0x4] sm:$0xf]
        %v372 = vld [vmem:[#allocation5 + $0x1c] sm:$0xf]
        %v374 = vlaneseq
        %v375 = vshrl.u32 %v374, 7
        %v376 = vsub.s32 0, %v375
        %v377 = vrot.slane %v258, %v376
        %380 = vrot.lane.b32.xlu0 %v370, 96
        %v381 = vpop.permute.xlu0 %380
        %vm382 = vcmask 130048
        %v384 = vsel %vm382, %v370, 0
        %v387 = vsel %vm382, %v381, 0
        %389 = vmatprep.subr.bf16.mxu0 0
        %390 = vmatpush1.bf16.xpose.msra.mxu0 %v387
        %391 = vmatprep.subr.bf16.mxu0 0
        %392 = vmatpush1.bf16.xpose.msra.mxu0 0
        %393 = vmatprep.subr.bf16.mxu0 0
        %394 = vmatpush1.bf16.xpose.msra.mxu0 0
        %395 = vmatprep.subr.bf16.mxu0 0
        %396 = vmatpush1.bf16.xpose.msra.mxu0 0
        %397 = vmatprep.subr.bf16.mxu0 0
        %398 = vmatpush1.bf16.xpose.msra.mxu0 0
        %399 = vmatprep.subr.bf16.mxu0 0
        %400 = vmatpush1.bf16.xpose.msra.mxu0 0
        %401 = vmatprep.subr.bf16.mxu0 0
        %402 = vmatpush1.bf16.xpose.msra.mxu0 0
        %403 = vmatprep.subr.bf16.mxu0 0
        %404 = vmatpush1.bf16.xpose.msra.mxu0 0
        %405 = vmatprep.subr.bf16.mxu0 0
        %406 = vmatpush1.bf16.xpose.msra.mxu0 0
        %407 = vmatprep.subr.bf16.mxu0 0
        %408 = vmatpush1.bf16.xpose.msra.mxu0 0
        %409 = vmatprep.subr.bf16.mxu0 0
        %410 = vmatpush1.bf16.xpose.msra.mxu0 0
        %411 = vmatprep.subr.bf16.mxu0 0
        %412 = vmatpush1.bf16.xpose.msra.mxu0 0
        %413 = vmatprep.subr.bf16.mxu0 0
        %414 = vmatpush1.bf16.xpose.msra.mxu0 0
        %415 = vmatprep.subr.bf16.mxu0 0
        %416 = vmatpush1.bf16.xpose.msra.mxu0 0
        %417 = vmatprep.subr.bf16.mxu0 0
        %418 = vmatpush1.bf16.xpose.msra.mxu0 0
        %419 = vmatprep.subr.bf16.mxu0 0
        %420 = vmatpush1.bf16.xpose.msra.mxu0 0
        %421 = vmatprep.mubr.bf16.mxu0 0
        %422 = vmatmul.mubr.bf16.gmra.mrb[0].mxu0 %v384
        %v423 = vpop.f32.mrb[0].mxu0
        %v424 = vadd.f32 %v377, %v423
        %v425 = vpop.f32.mrb[0].mxu0
        %v426 = vpop.f32.mrb[0].mxu0
        %v427 = vpop.f32.mrb[0].mxu0
        %428 = vdwg.mxu0
        %vm429 = vcmask 64512
        %v430 = vsel %vm429, %v424, -inf
        %431 = vmax.xlane.f32.xlu0 %v430
        %v432 = vpop.xlane.xlu0 %431
        %v433 = vsub.f32 %v424, %v432
        %v434 = vmul.f32 %v433, 1.442695
        %v435 = vpow.pop %v434
        %v436 = vsel %vm429, %v435, 0.0
        %437 = vadd.xlane.f32.xlu0 %v436
        %v438 = vpop.xlane.xlu0 %437
        %v439 = vrcp.pop %v438
        %v440 = vmul.f32 %v435, %v439
        %v441 = vpack.c.bf16 %v440, %v440
        %442 = vrot.lane.b32.xlu0 %v370, 64
        %v443 = vpop.permute.xlu0 %442
        %v445 = vsel %vm429, %v441, 0
        %vm447 = vcmask 1043456
        %v449 = vsel %vm447, %v443, 0
        %451 = vmatprep.subr.bf16.mxu0 0
        %452 = vmatpush1.bf16.msra.mxu0 %v449
        %453 = vmatprep.subr.bf16.mxu0 0
        %454 = vmatpush1.bf16.msra.mxu0 0
        %455 = vmatprep.subr.bf16.mxu0 0
        %456 = vmatpush1.bf16.msra.mxu0 0
        %457 = vmatprep.subr.bf16.mxu0 0
        %458 = vmatpush1.bf16.msra.mxu0 0
        %459 = vmatprep.subr.bf16.mxu0 0
        %460 = vmatpush1.bf16.msra.mxu0 0
        %461 = vmatprep.subr.bf16.mxu0 0
        %462 = vmatpush1.bf16.msra.mxu0 0
        %463 = vmatprep.subr.bf16.mxu0 0
        %464 = vmatpush1.bf16.msra.mxu0 0
        %465 = vmatprep.subr.bf16.mxu0 0
        %466 = vmatpush1.bf16.msra.mxu0 0
        %467 = vmatprep.subr.bf16.mxu0 0
        %468 = vmatpush1.bf16.msra.mxu0 0
        %469 = vmatprep.subr.bf16.mxu0 0
        %470 = vmatpush1.bf16.msra.mxu0 0
        %471 = vmatprep.subr.bf16.mxu0 0
        %472 = vmatpush1.bf16.msra.mxu0 0
        %473 = vmatprep.subr.bf16.mxu0 0
        %474 = vmatpush1.bf16.msra.mxu0 0
        %475 = vmatprep.subr.bf16.mxu0 0
        %476 = vmatpush1.bf16.msra.mxu0 0
        %477 = vmatprep.subr.bf16.mxu0 0
        %478 = vmatpush1.bf16.msra.mxu0 0
        %479 = vmatprep.subr.bf16.mxu0 0
        %480 = vmatpush1.bf16.msra.mxu0 0
        %481 = vmatprep.subr.bf16.mxu0 0
        %482 = vmatpush1.bf16.msra.mxu0 0
        %483 = vmatprep.mubr.bf16.mxu0 0
        %484 = vmatmul.mubr.bf16.gmra.mrb[0].mxu0 %v445
        %v485 = vpop.f32.mrb[0].mxu0
        %v486 = vadd.f32 0.0, %v485
        %v487 = vpop.f32.mrb[0].mxu0
        %v488 = vpop.f32.mrb[0].mxu0
        %v489 = vpop.f32.mrb[0].mxu0
        %490 = vdwg.mxu0
        %v491 = vpack.c.bf16 %v486, %v486
        %v494 = vunpack.c.l.b16 %v371
        %v495 = vunpack.c.l.b16 %v372
        %v496 = vpack.c.b16 %v495, %v494
        %v499 = vsel %vm382, %v491, 0
        %501 = vmatprep.subr.bf16.mxu0 0
        %502 = vmatpush1.bf16.msra.mxu0 %v496
        %503 = vmatprep.subr.bf16.mxu0 0
        %504 = vmatpush1.bf16.msra.mxu0 0
        %505 = vmatprep.subr.bf16.mxu0 0
        %506 = vmatpush1.bf16.msra.mxu0 0
        %507 = vmatprep.subr.bf16.mxu0 0
        %508 = vmatpush1.bf16.msra.mxu0 0
        %509 = vmatprep.subr.bf16.mxu0 0
        %510 = vmatpush1.bf16.msra.mxu0 0
        %511 = vmatprep.subr.bf16.mxu0 0
        %512 = vmatpush1.bf16.msra.mxu0 0
        %513 = vmatprep.subr.bf16.mxu0 0
        %514 = vmatpush1.bf16.msra.mxu0 0
        %515 = vmatprep.subr.bf16.mxu0 0
        %516 = vmatpush1.bf16.msra.mxu0 0
        %517 = vmatprep.subr.bf16.mxu0 0
        %518 = vmatpush1.bf16.msra.mxu0 0
        %519 = vmatprep.subr.bf16.mxu0 0
        %520 = vmatpush1.bf16.msra.mxu0 0
        %521 = vmatprep.subr.bf16.mxu0 0
        %522 = vmatpush1.bf16.msra.mxu0 0
        %523 = vmatprep.subr.bf16.mxu0 0
        %524 = vmatpush1.bf16.msra.mxu0 0
        %525 = vmatprep.subr.bf16.mxu0 0
        %526 = vmatpush1.bf16.msra.mxu0 0
        %527 = vmatprep.subr.bf16.mxu0 0
        %528 = vmatpush1.bf16.msra.mxu0 0
        %529 = vmatprep.subr.bf16.mxu0 0
        %530 = vmatpush1.bf16.msra.mxu0 0
        %531 = vmatprep.subr.bf16.mxu0 0
        %532 = vmatpush1.bf16.msra.mxu0 0
        %533 = vmatprep.mubr.bf16.mxu0 0
        %534 = vmatmul.mubr.bf16.gmra.mrb[0].mxu0 %v499
        %v535 = vpop.f32.mrb[0].mxu0
        %v536 = vadd.f32 0.0, %v535
        %v537 = vpop.f32.mrb[0].mxu0
        %v538 = vpop.f32.mrb[0].mxu0
        %v539 = vpop.f32.mrb[0].mxu0
        %540 = vdwg.mxu0
        %v541 = vlaneseq
        %v542 = vshrl.u32 %v541, 7
        %v543 = vsub.s32 0, %v542
        %v544 = vrot.slane %v287, %v543
        %v545 = vadd.f32 %v544, %v536
        %v546 = vld [vmem:[#allocation5 + $0x34] sm:$0xf]
        %v547 = vld [vmem:[#allocation5 + $0x4c] sm:$0xf]
        %548 = vrot.lane.b32.xlu0 %v370, 112
        %v549 = vpop.permute.xlu0 %548
        %550 = vrot.lane.b32.xlu0 %v370, 80
        %v551 = vpop.permute.xlu0 %550
        %v553 = vsel %vm382, %v549, 0
        %v556 = vsel %vm382, %v551, 0
        %558 = vmatprep.subr.bf16.mxu0 0
        %559 = vmatpush1.bf16.xpose.msra.mxu0 %v556
        %560 = vmatprep.subr.bf16.mxu0 0
        %561 = vmatpush1.bf16.xpose.msra.mxu0 0
        %562 = vmatprep.subr.bf16.mxu0 0
        %563 = vmatpush1.bf16.xpose.msra.mxu0 0
        %564 = vmatprep.subr.bf16.mxu0 0
        %565 = vmatpush1.bf16.xpose.msra.mxu0 0
        %566 = vmatprep.subr.bf16.mxu0 0
        %567 = vmatpush1.bf16.xpose.msra.mxu0 0
        %568 = vmatprep.subr.bf16.mxu0 0
        %569 = vmatpush1.bf16.xpose.msra.mxu0 0
        %570 = vmatprep.subr.bf16.mxu0 0
        %571 = vmatpush1.bf16.xpose.msra.mxu0 0
        %572 = vmatprep.subr.bf16.mxu0 0
        %573 = vmatpush1.bf16.xpose.msra.mxu0 0
        %574 = vmatprep.subr.bf16.mxu0 0
        %575 = vmatpush1.bf16.xpose.msra.mxu0 0
        %576 = vmatprep.subr.bf16.mxu0 0
        %577 = vmatpush1.bf16.xpose.msra.mxu0 0
        %578 = vmatprep.subr.bf16.mxu0 0
        %579 = vmatpush1.bf16.xpose.msra.mxu0 0
        %580 = vmatprep.subr.bf16.mxu0 0
        %581 = vmatpush1.bf16.xpose.msra.mxu0 0
        %582 = vmatprep.subr.bf16.mxu0 0
        %583 = vmatpush1.bf16.xpose.msra.mxu0 0
        %584 = vmatprep.subr.bf16.mxu0 0
        %585 = vmatpush1.bf16.xpose.msra.mxu0 0
        %586 = vmatprep.subr.bf16.mxu0 0
        %587 = vmatpush1.bf16.xpose.msra.mxu0 0
        %588 = vmatprep.subr.bf16.mxu0 0
        %589 = vmatpush1.bf16.xpose.msra.mxu0 0
        %590 = vmatprep.mubr.bf16.mxu0 0
        %591 = vmatmul.mubr.bf16.gmra.mrb[0].mxu0 %v553
        %v592 = vpop.f32.mrb[0].mxu0
        %v593 = vadd.f32 %v377, %v592
        %v594 = vpop.f32.mrb[0].mxu0
        %v595 = vpop.f32.mrb[0].mxu0
        %v596 = vpop.f32.mrb[0].mxu0
        %597 = vdwg.mxu0
        %v598 = vsel %vm429, %v593, -inf
        %599 = vmax.xlane.f32.xlu0 %v598
        %v600 = vpop.xlane.xlu0 %599
        %v601 = vsub.f32 %v593, %v600
        %v602 = vmul.f32 %v601, 1.442695
        %v603 = vpow.pop %v602
        %v604 = vsel %vm429, %v603, 0.0
        %605 = vadd.xlane.f32.xlu0 %v604
        %v606 = vpop.xlane.xlu0 %605
        %v607 = vrcp.pop %v606
        %v608 = vmul.f32 %v603, %v607
        %v609 = vpack.c.bf16 %v608, %v608
        %610 = vrot.lane.b32.xlu0 %v370, 48
        %v611 = vpop.permute.xlu0 %610
        %v613 = vsel %vm429, %v609, 0
        %v616 = vsel %vm447, %v611, 0
        %618 = vmatprep.subr.bf16.mxu0 0
        %619 = vmatpush1.bf16.msra.mxu0 %v616
        %620 = vmatprep.subr.bf16.mxu0 0
        %621 = vmatpush1.bf16.msra.mxu0 0
        %622 = vmatprep.subr.bf16.mxu0 0
        %623 = vmatpush1.bf16.msra.mxu0 0
        %624 = vmatprep.subr.bf16.mxu0 0
        %625 = vmatpush1.bf16.msra.mxu0 0
        %626 = vmatprep.subr.bf16.mxu0 0
        %627 = vmatpush1.bf16.msra.mxu0 0
        %628 = vmatprep.subr.bf16.mxu0 0
        %629 = vmatpush1.bf16.msra.mxu0 0
        %630 = vmatprep.subr.bf16.mxu0 0
        %631 = vmatpush1.bf16.msra.mxu0 0
        %632 = vmatprep.subr.bf16.mxu0 0
        %633 = vmatpush1.bf16.msra.mxu0 0
        %634 = vmatprep.subr.bf16.mxu0 0
        %635 = vmatpush1.bf16.msra.mxu0 0
        %636 = vmatprep.subr.bf16.mxu0 0
        %637 = vmatpush1.bf16.msra.mxu0 0
        %638 = vmatprep.subr.bf16.mxu0 0
        %639 = vmatpush1.bf16.msra.mxu0 0
        %640 = vmatprep.subr.bf16.mxu0 0
        %641 = vmatpush1.bf16.msra.mxu0 0
        %642 = vmatprep.subr.bf16.mxu0 0
        %643 = vmatpush1.bf16.msra.mxu0 0
        %644 = vmatprep.subr.bf16.mxu0 0
        %645 = vmatpush1.bf16.msra.mxu0 0
        %646 = vmatprep.subr.bf16.mxu0 0
        %647 = vmatpush1.bf16.msra.mxu0 0
        %648 = vmatprep.subr.bf16.mxu0 0
        %649 = vmatpush1.bf16.msra.mxu0 0
        %650 = vmatprep.mubr.bf16.mxu0 0
        %651 = vmatmul.mubr.bf16.gmra.mrb[0].mxu0 %v613
        %v652 = vpop.f32.mrb[0].mxu0
        %v653 = vadd.f32 0.0, %v652
        %v654 = vpop.f32.mrb[0].mxu0
        %v655 = vpop.f32.mrb[0].mxu0
        %v656 = vpop.f32.mrb[0].mxu0
        %657 = vdwg.mxu0
        %v658 = vpack.c.bf16 %v653, %v653
        %v661 = vunpack.c.l.b16 %v546
        %v662 = vunpack.c.l.b16 %v547
        %v663 = vpack.c.b16 %v662, %v661
        %v666 = vsel %vm382, %v658, 0
        %668 = vmatprep.subr.bf16.mxu0 0
        %669 = vmatpush1.bf16.msra.mxu0 %v663
        %670 = vmatprep.subr.bf16.mxu0 0
        %671 = vmatpush1.bf16.msra.mxu0 0
        %672 = vmatprep.subr.bf16.mxu0 0
        %673 = vmatpush1.bf16.msra.mxu0 0
        %674 = vmatprep.subr.bf16.mxu0 0
        %675 = vmatpush1.bf16.msra.mxu0 0
        %676 = vmatprep.subr.bf16.mxu0 0
        %677 = vmatpush1.bf16.msra.mxu0 0
        %678 = vmatprep.subr.bf16.mxu0 0
        %679 = vmatpush1.bf16.msra.mxu0 0
        %680 = vmatprep.subr.bf16.mxu0 0
        %681 = vmatpush1.bf16.msra.mxu0 0
        %682 = vmatprep.subr.bf16.mxu0 0
        %683 = vmatpush1.bf16.msra.mxu0 0
        %684 = vmatprep.subr.bf16.mxu0 0
        %685 = vmatpush1.bf16.msra.mxu0 0
        %686 = vmatprep.subr.bf16.mxu0 0
        %687 = vmatpush1.bf16.msra.mxu0 0
        %688 = vmatprep.subr.bf16.mxu0 0
        %689 = vmatpush1.bf16.msra.mxu0 0
        %690 = vmatprep.subr.bf16.mxu0 0
        %691 = vmatpush1.bf16.msra.mxu0 0
        %692 = vmatprep.subr.bf16.mxu0 0
        %693 = vmatpush1.bf16.msra.mxu0 0
        %694 = vmatprep.subr.bf16.mxu0 0
        %695 = vmatpush1.bf16.msra.mxu0 0
        %696 = vmatprep.subr.bf16.mxu0 0
        %697 = vmatpush1.bf16.msra.mxu0 0
        %698 = vmatprep.subr.bf16.mxu0 0
        %699 = vmatpush1.bf16.msra.mxu0 0
        %700 = vmatprep.mubr.bf16.mxu0 0
        %701 = vmatmul.mubr.bf16.gmra.mrb[0].mxu0 %v666
        %v702 = vpop.f32.mrb[0].mxu0
        %v703 = vadd.f32 0.0, %v702
        %v704 = vpop.f32.mrb[0].mxu0
        %v705 = vpop.f32.mrb[0].mxu0
        %v706 = vpop.f32.mrb[0].mxu0
        %707 = vdwg.mxu0
        %v708 = vadd.f32 %v545, %v703
        %v709 = vadd.f32 %v285, %v708
        %v710 = vsel %vm261, %v709, 0.0
        %711 = vadd.xlane.f32.xlu0 %v710
        %v712 = vpop.xlane.xlu0 %711
        %v713 = vmul.f32 %v712, %v265
        %v714 = vsub.f32 %v709, %v713
        %v715 = vmul.f32 %v714, %v714
        %v716 = vsel %vm261, %v715, 0.0
        %717 = vadd.xlane.f32.xlu0 %v716
        %v718 = vpop.xlane.xlu0 %717
        %v719 = vmul.f32 %v718, %v265
        %v720 = vadd.f32 %v719, 1e-05
        %v721 = vrsqrt.pop %v720
        %v722 = vmul.f32 %v714, %v721
        %v723 = vlaneseq
        %v724 = vshrl.u32 %v723, 7
        %v725 = vsub.s32 0, %v724
        %v726 = vrot.slane %v290, %v725
        %v727 = vmul.f32 %v722, %v726
        %v728 = vlaneseq
        %v729 = vshrl.u32 %v728, 7
        %v730 = vsub.s32 0, %v729
        %v731 = vrot.slane %v291, %v730
        %v732 = vadd.f32 %v727, %v731
        %v733 = vpack.c.bf16 %v732, %v732
        %v734 = vlaneseq
        %v735 = vshrl.u32 %v734, 7
        %v736 = vsub.s32 0, %v735
        %v737 = vrot.slane %v288, %v736
        %v742 = vunpack.c.l.b16 %v298
        %v743 = vunpack.c.l.b16 %v299
        %v744 = vunpack.c.l.b16 %v300
        %v745 = vunpack.c.l.b16 %v301
        %v746 = vpack.c.b16 %v743, %v742
        %v747 = vpack.c.b16 %v745, %v744
        %v751 = vsel %vm261, %v733, 0
        %753 = vmatprep.subr.bf16.mxu0 0
        %754 = vmatpush1.bf16.msra.mxu0 %v746
        %755 = vmatprep.subr.bf16.mxu0 0
        %756 = vmatpush1.bf16.msra.mxu0 %v747
        %757 = vmatprep.subr.bf16.mxu0 0
        %758 = vmatpush1.bf16.msra.mxu0 0
        %759 = vmatprep.subr.bf16.mxu0 0
        %760 = vmatpush1.bf16.msra.mxu0 0
        %761 = vmatprep.subr.bf16.mxu0 0
        %762 = vmatpush1.bf16.msra.mxu0 0
        %763 = vmatprep.subr.bf16.mxu0 0
        %764 = vmatpush1.bf16.msra.mxu0 0
        %765 = vmatprep.subr.bf16.mxu0 0
        %766 = vmatpush1.bf16.msra.mxu0 0
        %767 = vmatprep.subr.bf16.mxu0 0
        %768 = vmatpush1.bf16.msra.mxu0 0
        %769 = vmatprep.subr.bf16.mxu0 0
        %770 = vmatpush1.bf16.msra.mxu0 0
        %771 = vmatprep.subr.bf16.mxu0 0
        %772 = vmatpush1.bf16.msra.mxu0 0
        %773 = vmatprep.subr.bf16.mxu0 0
        %774 = vmatpush1.bf16.msra.mxu0 0
        %775 = vmatprep.subr.bf16.mxu0 0
        %776 = vmatpush1.bf16.msra.mxu0 0
        %777 = vmatprep.subr.bf16.mxu0 0
        %778 = vmatpush1.bf16.msra.mxu0 0
        %779 = vmatprep.subr.bf16.mxu0 0
        %780 = vmatpush1.bf16.msra.mxu0 0
        %781 = vmatprep.subr.bf16.mxu0 0
        %782 = vmatpush1.bf16.msra.mxu0 0
        %783 = vmatprep.subr.bf16.mxu0 0
        %784 = vmatpush1.bf16.msra.mxu0 0
        %785 = vmatprep.mubr.bf16.mxu0 0
        %786 = vmatmul.mubr.bf16.gmra.mrb[0].mxu0 %v751
        %v787 = vpop.f32.mrb[0].mxu0
        %v788 = vadd.f32 %v737, %v787
        %v789 = vpop.f32.mrb[0].mxu0
        %v790 = vpop.f32.mrb[0].mxu0
        %v791 = vpop.f32.mrb[0].mxu0
        %792 = vdwg.mxu0
        %v793 = vmul.f32 %v788, 0.5
        %v794 = vmul.f32 %v788, 0.044715
        %v795 = vmul.f32 %v794, %v788
        %v796 = vmul.f32 %v795, %v788
        %v797 = vadd.f32 %v788, %v796
        %v798 = vmul.f32 %v797, 0.7978846
        %v799 = vtanh.pop %v798
        %v800 = vadd.f32 %v799, 1.0
        %v801 = vmul.f32 %v793, %v800
        %v802 = vpack.c.bf16 %v801, %v801
        %v803 = vlaneseq
        %v804 = vshrl.u32 %v803, 7
        %v805 = vsub.s32 0, %v804
        %v806 = vrot.slane %v289, %v805
        %v815 = vunpack.c.l.b16 %v302
        %v816 = vunpack.c.l.b16 %v303
        %v817 = vunpack.c.l.b16 %v304
        %v818 = vunpack.c.l.b16 %v305
        %v819 = vunpack.c.l.b16 %v306
        %v820 = vunpack.c.l.b16 %v307
        %v821 = vunpack.c.l.b16 %v308
        %v822 = vunpack.c.l.b16 %v309
        %v823 = vpack.c.b16 %v816, %v815
        %v824 = vpack.c.b16 %v818, %v817
        %v825 = vpack.c.b16 %v820, %v819
        %v826 = vpack.c.b16 %v822, %v821
        %vm831 = vcmask 523264
        %v833 = vsel %vm831, %v802, 0
        %835 = vmatprep.subr.bf16.mxu0 0
        %836 = vmatpush1.bf16.msra.mxu0 %v823
        %837 = vmatprep.subr.bf16.mxu0 0
        %838 = vmatpush1.bf16.msra.mxu0 %v824
        %839 = vmatprep.subr.bf16.mxu0 0
        %840 = vmatpush1.bf16.msra.mxu0 %v825
        %841 = vmatprep.subr.bf16.mxu0 0
        %842 = vmatpush1.bf16.msra.mxu0 %v826
        %843 = vmatprep.subr.bf16.mxu0 0
        %844 = vmatpush1.bf16.msra.mxu0 0
        %845 = vmatprep.subr.bf16.mxu0 0
        %846 = vmatpush1.bf16.msra.mxu0 0
        %847 = vmatprep.subr.bf16.mxu0 0
        %848 = vmatpush1.bf16.msra.mxu0 0
        %849 = vmatprep.subr.bf16.mxu0 0
        %850 = vmatpush1.bf16.msra.mxu0 0
        %851 = vmatprep.subr.bf16.mxu0 0
        %852 = vmatpush1.bf16.msra.mxu0 0
        %853 = vmatprep.subr.bf16.mxu0 0
        %854 = vmatpush1.bf16.msra.mxu0 0
        %855 = vmatprep.subr.bf16.mxu0 0
        %856 = vmatpush1.bf16.msra.mxu0 0
        %857 = vmatprep.subr.bf16.mxu0 0
        %858 = vmatpush1.bf16.msra.mxu0 0
        %859 = vmatprep.subr.bf16.mxu0 0
        %860 = vmatpush1.bf16.msra.mxu0 0
        %861 = vmatprep.subr.bf16.mxu0 0
        %862 = vmatpush1.bf16.msra.mxu0 0
        %863 = vmatprep.subr.bf16.mxu0 0
        %864 = vmatpush1.bf16.msra.mxu0 0
        %865 = vmatprep.subr.bf16.mxu0 0
        %866 = vmatpush1.bf16.msra.mxu0 0
        %867 = vmatprep.mubr.bf16.mxu0 0
        %868 = vmatmul.mubr.bf16.gmra.mrb[0].mxu0 %v833
        %v869 = vpop.f32.mrb[0].mxu0
        %v870 = vadd.f32 %v806, %v869
        %v871 = vpop.f32.mrb[0].mxu0
        %v872 = vpop.f32.mrb[0].mxu0
        %v873 = vpop.f32.mrb[0].mxu0
        %874 = vdwg.mxu0
        %v875 = vadd.f32 %v732, %v870
        %v876 = vsel %vm261, %v875, 0.0
        %877 = vadd.xlane.f32.xlu0 %v876
        %v878 = vpop.xlane.xlu0 %877
        %v879 = vmul.f32 %v878, %v265
        %v880 = vsub.f32 %v875, %v879
        %v881 = vmul.f32 %v880, %v880
        %v882 = vsel %vm261, %v881, 0.0
        %883 = vadd.xlane.f32.xlu0 %v882
        %v884 = vpop.xlane.xlu0 %883
        %v885 = vmul.f32 %v884, %v265
        %v886 = vadd.f32 %v885, 1e-05
        %v887 = vrsqrt.pop %v886
        %v888 = vmul.f32 %v880, %v887
        %v889 = vlaneseq
        %v890 = vshrl.u32 %v889, 7
        %v891 = vsub.s32 0, %v890
        %v892 = vrot.slane %v292, %v891
        %v893 = vmul.f32 %v888, %v892
        %v894 = vlaneseq
        %v895 = vshrl.u32 %v894, 7
        %v896 = vsub.s32 0, %v895
        %v897 = vrot.slane %v293, %v896
        %v898 = vadd.f32 %v893, %v897
        %v899 = vld [vmem:[#allocation7 + $0x8] sm:$0x1]
        %v900 = vld [vmem:[#allocation7 + $0x9] sm:$0x1]
        %v901 = vld [vmem:[#allocation7 + $0xa] sm:$0x1]
        %v902 = vld [vmem:[#allocation7 + $0xb] sm:$0x1]
        %v903 = vld [vmem:[#allocation7 + $0xc] sm:$0x1]
        %v904 = vld [vmem:[#allocation7 + $0xd] sm:$0x1]
        %v905 = vld [vmem:[#allocation7 + $0xe] sm:$0x1]
        %v906 = vld [vmem:[#allocation7 + $0xf] sm:$0x1]
        %s907 = scalar_lea.vmem [#allocation5], 192
        %v908 = vld [vmem:[%s907] sm:$0xf]
        %v909 = vld [vmem:[%s907 + $0x18] sm:$0xf]
        %v910 = vld [vmem:[%s907 + $0x30] sm:$0xf]
        %v911 = vld [vmem:[%s907 + $0x48] sm:$0xf]
        %v912 = vld [vmem:[%s907 + $0x8] sm:$0xf]
        %v913 = vld [vmem:[%s907 + $0x20] sm:$0xf]
        %v914 = vld [vmem:[%s907 + $0x38] sm:$0xf]
        %v915 = vld [vmem:[%s907 + $0x50] sm:$0xf]
        %v916 = vld [vmem:[%s907 + $0xc] sm:$0xf]
        %v917 = vld [vmem:[%s907 + $0x24] sm:$0xf]
        %v918 = vld [vmem:[%s907 + $0x3c] sm:$0xf]
        %v919 = vld [vmem:[%s907 + $0x54] sm:$0xf]
        %v920 = vld [vmem:[%s907 + $0x6c] sm:$0xf]
        %v921 = vld [vmem:[%s907 + $0x84] sm:$0xf]
        %v922 = vld [vmem:[%s907 + $0x9c] sm:$0xf]
        %v923 = vld [vmem:[%s907 + $0xb4] sm:$0xf]
        %v924 = vpack.c.bf16 %v898, %v898
        %v925 = vlaneseq
        %v926 = vshrl.u32 %v925, 7
        %v927 = vsub.s32 0, %v926
        %v928 = vrot.slane %v899, %v927
        %v933 = vunpack.c.l.b16 %v908
        %v934 = vunpack.c.l.b16 %v909
        %v935 = vunpack.c.l.b16 %v910
        %v936 = vunpack.c.l.b16 %v911
        %v937 = vpack.c.b16 %v934, %v933
        %v938 = vpack.c.b16 %v936, %v935
        %v942 = vsel %vm261, %v924, 0
        %944 = vmatprep.subr.bf16.mxu0 0
        %945 = vmatpush1.bf16.msra.mxu0 %v937
        %946 = vmatprep.subr.bf16.mxu0 0
        %947 = vmatpush1.bf16.msra.mxu0 %v938
        %948 = vmatprep.subr.bf16.mxu0 0
        %949 = vmatpush1.bf16.msra.mxu0 0
        %950 = vmatprep.subr.bf16.mxu0 0
        %951 = vmatpush1.bf16.msra.mxu0 0
        %952 = vmatprep.subr.bf16.mxu0 0
        %953 = vmatpush1.bf16.msra.mxu0 0
        %954 = vmatprep.subr.bf16.mxu0 0
        %955 = vmatpush1.bf16.msra.mxu0 0
        %956 = vmatprep.subr.bf16.mxu0 0
        %957 = vmatpush1.bf16.msra.mxu0 0
        %958 = vmatprep.subr.bf16.mxu0 0
        %959 = vmatpush1.bf16.msra.mxu0 0
        %960 = vmatprep.subr.bf16.mxu0 0
        %961 = vmatpush1.bf16.msra.mxu0 0
        %962 = vmatprep.subr.bf16.mxu0 0
        %963 = vmatpush1.bf16.msra.mxu0 0
        %964 = vmatprep.subr.bf16.mxu0 0
        %965 = vmatpush1.bf16.msra.mxu0 0
        %966 = vmatprep.subr.bf16.mxu0 0
        %967 = vmatpush1.bf16.msra.mxu0 0
        %968 = vmatprep.subr.bf16.mxu0 0
        %969 = vmatpush1.bf16.msra.mxu0 0
        %970 = vmatprep.subr.bf16.mxu0 0
        %971 = vmatpush1.bf16.msra.mxu0 0
        %972 = vmatprep.subr.bf16.mxu0 0
        %973 = vmatpush1.bf16.msra.mxu0 0
        %974 = vmatprep.subr.bf16.mxu0 0
        %975 = vmatpush1.bf16.msra.mxu0 0
        %976 = vmatprep.mubr.bf16.mxu0 0
        %977 = vmatmul.mubr.bf16.gmra.mrb[0].mxu0 %v942
        %v978 = vpop.f32.mrb[0].mxu0
        %v979 = vadd.f32 %v928, %v978
        %v980 = vpop.f32.mrb[0].mxu0
        %v981 = vpop.f32.mrb[0].mxu0
        %v982 = vpop.f32.mrb[0].mxu0
        %983 = vdwg.mxu0
        %v984 = vpack.c.bf16 %v979, %v979
        %v985 = vld [vmem:[%s907 + $0x4] sm:$0xf]
        %v986 = vld [vmem:[%s907 + $0x1c] sm:$0xf]
        %988 = vrot.lane.b32.xlu0 %v984, 96
        %v989 = vpop.permute.xlu0 %988
        %v991 = vsel %vm382, %v984, 0
        %v994 = vsel %vm382, %v989, 0
        %996 = vmatprep.subr.bf16.mxu0 0
        %997 = vmatpush1.bf16.xpose.msra.mxu0 %v994
        %998 = vmatprep.subr.bf16.mxu0 0
        %999 = vmatpush1.bf16.xpose.msra.mxu0 0
        %1000 = vmatprep.subr.bf16.mxu0 0
        %1001 = vmatpush1.bf16.xpose.msra.mxu0 0
        %1002 = vmatprep.subr.bf16.mxu0 0
        %1003 = vmatpush1.bf16.xpose.msra.mxu0 0
        %1004 = vmatprep.subr.bf16.mxu0 0
        %1005 = vmatpush1.bf16.xpose.msra.mxu0 0
        %1006 = vmatprep.subr.bf16.mxu0 0
        %1007 = vmatpush1.bf16.xpose.msra.mxu0 0
        %1008 = vmatprep.subr.bf16.mxu0 0
        %1009 = vmatpush1.bf16.xpose.msra.mxu0 0
        %1010 = vmatprep.subr.bf16.mxu0 0
        %1011 = vmatpush1.bf16.xpose.msra.mxu0 0
        %1012 = vmatprep.subr.bf16.mxu0 0
        %1013 = vmatpush1.bf16.xpose.msra.mxu0 0
        %1014 = vmatprep.subr.bf16.mxu0 0
        %1015 = vmatpush1.bf16.xpose.msra.mxu0 0
        %1016 = vmatprep.subr.bf16.mxu0 0
        %1017 = vmatpush1.bf16.xpose.msra.mxu0 0
        %1018 = vmatprep.subr.bf16.mxu0 0
        %1019 = vmatpush1.bf16.xpose.msra.mxu0 0
        %1020 = vmatprep.subr.bf16.mxu0 0
        %1021 = vmatpush1.bf16.xpose.msra.mxu0 0
        %1022 = vmatprep.subr.bf16.mxu0 0
        %1023 = vmatpush1.bf16.xpose.msra.mxu0 0
        %1024 = vmatprep.subr.bf16.mxu0 0
        %1025 = vmatpush1.bf16.xpose.msra.mxu0 0
        %1026 = vmatprep.subr.bf16.mxu0 0
        %1027 = vmatpush1.bf16.xpose.msra.mxu0 0
        %1028 = vmatprep.mubr.bf16.mxu0 0
        %1029 = vmatmul.mubr.bf16.gmra.mrb[0].mxu0 %v991
        %v1030 = vpop.f32.mrb[0].mxu0
        %v1031 = vadd.f32 %v377, %v1030
        %v1032 = vpop.f32.mrb[0].mxu0
        %v1033 = vpop.f32.mrb[0].mxu0
        %v1034 = vpop.f32.mrb[0].mxu0
        %1035 = vdwg.mxu0
        %v1036 = vsel %vm429, %v1031, -inf
        %1037 = vmax.xlane.f32.xlu0 %v1036
        %v1038 = vpop.xlane.xlu0 %1037
        %v1039 = vsub.f32 %v1031, %v1038
        %v1040 = vmul.f32 %v1039, 1.442695
        %v1041 = vpow.pop %v1040
        %v1042 = vsel %vm429, %v1041, 0.0
        %1043 = vadd.xlane.f32.xlu0 %v1042
        %v1044 = vpop.xlane.xlu0 %1043
        %v1045 = vrcp.pop %v1044
        %v1046 = vmul.f32 %v1041, %v1045
        %v1047 = vpack.c.bf16 %v1046, %v1046
        %1048 = vrot.lane.b32.xlu0 %v984, 64
        %v1049 = vpop.permute.xlu0 %1048
        %v1051 = vsel %vm429, %v1047, 0
        %v1054 = vsel %vm447, %v1049, 0
        %1056 = vmatprep.subr.bf16.mxu0 0
        %1057 = vmatpush1.bf16.msra.mxu0 %v1054
        %1058 = vmatprep.subr.bf16.mxu0 0
        %1059 = vmatpush1.bf16.msra.mxu0 0
        %1060 = vmatprep.subr.bf16.mxu0 0
        %1061 = vmatpush1.bf16.msra.mxu0 0
        %1062 = vmatprep.subr.bf16.mxu0 0
        %1063 = vmatpush1.bf16.msra.mxu0 0
        %1064 = vmatprep.subr.bf16.mxu0 0
        %1065 = vmatpush1.bf16.msra.mxu0 0
        %1066 = vmatprep.subr.bf16.mxu0 0
        %1067 = vmatpush1.bf16.msra.mxu0 0
        %1068 = vmatprep.subr.bf16.mxu0 0
        %1069 = vmatpush1.bf16.msra.mxu0 0
        %1070 = vmatprep.subr.bf16.mxu0 0
        %1071 = vmatpush1.bf16.msra.mxu0 0
        %1072 = vmatprep.subr.bf16.mxu0 0
        %1073 = vmatpush1.bf16.msra.mxu0 0
        %1074 = vmatprep.subr.bf16.mxu0 0
        %1075 = vmatpush1.bf16.msra.mxu0 0
        %1076 = vmatprep.subr.bf16.mxu0 0
        %1077 = vmatpush1.bf16.msra.mxu0 0
        %1078 = vmatprep.subr.bf16.mxu0 0
        %1079 = vmatpush1.bf16.msra.mxu0 0
        %1080 = vmatprep.subr.bf16.mxu0 0
        %1081 = vmatpush1.bf16.msra.mxu0 0
        %1082 = vmatprep.subr.bf16.mxu0 0
        %1083 = vmatpush1.bf16.msra.mxu0 0
        %1084 = vmatprep.subr.bf16.mxu0 0
        %1085 = vmatpush1.bf16.msra.mxu0 0
        %1086 = vmatprep.subr.bf16.mxu0 0
        %1087 = vmatpush1.bf16.msra.mxu0 0
        %1088 = vmatprep.mubr.bf16.mxu0 0
        %1089 = vmatmul.mubr.bf16.gmra.mrb[0].mxu0 %v1051
        %v1090 = vpop.f32.mrb[0].mxu0
        %v1091 = vadd.f32 0.0, %v1090
        %v1092 = vpop.f32.mrb[0].mxu0
        %v1093 = vpop.f32.mrb[0].mxu0
        %v1094 = vpop.f32.mrb[0].mxu0
        %1095 = vdwg.mxu0
        %v1096 = vpack.c.bf16 %v1091, %v1091
        %v1099 = vunpack.c.l.b16 %v985
        %v1100 = vunpack.c.l.b16 %v986
        %v1101 = vpack.c.b16 %v1100, %v1099
        %v1104 = vsel %vm382, %v1096, 0
        %1106 = vmatprep.subr.bf16.mxu0 0
        %1107 = vmatpush1.bf16.msra.mxu0 %v1101
        %1108 = vmatprep.subr.bf16.mxu0 0
        %1109 = vmatpush1.bf16.msra.mxu0 0
        %1110 = vmatprep.subr.bf16.mxu0 0
        %1111 = vmatpush1.bf16.msra.mxu0 0
        %1112 = vmatprep.subr.bf16.mxu0 0
        %1113 = vmatpush1.bf16.msra.mxu0 0
        %1114 = vmatprep.subr.bf16.mxu0 0
        %1115 = vmatpush1.bf16.msra.mxu0 0
        %1116 = vmatprep.subr.bf16.mxu0 0
        %1117 = vmatpush1.bf16.msra.mxu0 0
        %1118 = vmatprep.subr.bf16.mxu0 0
        %1119 = vmatpush1.bf16.msra.mxu0 0
        %1120 = vmatprep.subr.bf16.mxu0 0
        %1121 = vmatpush1.bf16.msra.mxu0 0
        %1122 = vmatprep.subr.bf16.mxu0 0
        %1123 = vmatpush1.bf16.msra.mxu0 0
        %1124 = vmatprep.subr.bf16.mxu0 0
        %1125 = vmatpush1.bf16.msra.mxu0 0
        %1126 = vmatprep.subr.bf16.mxu0 0
        %1127 = vmatpush1.bf16.msra.mxu0 0
        %1128 = vmatprep.subr.bf16.mxu0 0
        %1129 = vmatpush1.bf16.msra.mxu0 0
        %1130 = vmatprep.subr.bf16.mxu0 0
        %1131 = vmatpush1.bf16.msra.mxu0 0
        %1132 = vmatprep.subr.bf16.mxu0 0
        %1133 = vmatpush1.bf16.msra.mxu0 0
        %1134 = vmatprep.subr.bf16.mxu0 0
        %1135 = vmatpush1.bf16.msra.mxu0 0
        %1136 = vmatprep.subr.bf16.mxu0 0
        %1137 = vmatpush1.bf16.msra.mxu0 0
        %1138 = vmatprep.mubr.bf16.mxu0 0
        %1139 = vmatmul.mubr.bf16.gmra.mrb[0].mxu0 %v1104
        %v1140 = vpop.f32.mrb[0].mxu0
        %v1141 = vadd.f32 0.0, %v1140
        %v1142 = vpop.f32.mrb[0].mxu0
        %v1143 = vpop.f32.mrb[0].mxu0
        %v1144 = vpop.f32.mrb[0].mxu0
        %1145 = vdwg.mxu0
        %v1146 = vlaneseq
        %v1147 = vshrl.u32 %v1146, 7
        %v1148 = vsub.s32 0, %v1147
        %v1149 = vrot.slane %v900, %v1148
        %v1150 = vadd.f32 %v1149, %v1141
        %v1151 = vld [vmem:[%s907 + $0x34] sm:$0xf]
        %v1152 = vld [vmem:[%s907 + $0x4c] sm:$0xf]
        %1153 = vrot.lane.b32.xlu0 %v984, 112
        %v1154 = vpop.permute.xlu0 %1153
        %1155 = vrot.lane.b32.xlu0 %v984, 80
        %v1156 = vpop.permute.xlu0 %1155
        %v1158 = vsel %vm382, %v1154, 0
        %v1161 = vsel %vm382, %v1156, 0
        %1163 = vmatprep.subr.bf16.mxu0 0
        %1164 = vmatpush1.bf16.xpose.msra.mxu0 %v1161
        %1165 = vmatprep.subr.bf16.mxu0 0
        %1166 = vmatpush1.bf16.xpose.msra.mxu0 0
        %1167 = vmatprep.subr.bf16.mxu0 0
        %1168 = vmatpush1.bf16.xpose.msra.mxu0 0
        %1169 = vmatprep.subr.bf16.mxu0 0
        %1170 = vmatpush1.bf16.xpose.msra.mxu0 0
        %1171 = vmatprep.subr.bf16.mxu0 0
        %1172 = vmatpush1.bf16.xpose.msra.mxu0 0
        %1173 = vmatprep.subr.bf16.mxu0 0
        %1174 = vmatpush1.bf16.xpose.msra.mxu0 0
        %1175 = vmatprep.subr.bf16.mxu0 0
        %1176 = vmatpush1.bf16.xpose.msra.mxu0 0
        %1177 = vmatprep.subr.bf16.mxu0 0
        %1178 = vmatpush1.bf16.xpose.msra.mxu0 0
        %1179 = vmatprep.subr.bf16.mxu0 0
        %1180 = vmatpush1.bf16.xpose.msra.mxu0 0
        %1181 = vmatprep.subr.bf16.mxu0 0
        %1182 = vmatpush1.bf16.xpose.msra.mxu0 0
        %1183 = vmatprep.subr.bf16.mxu0 0
        %1184 = vmatpush1.bf16.xpose.msra.mxu0 0
        %1185 = vmatprep.subr.bf16.mxu0 0
        %1186 = vmatpush1.bf16.xpose.msra.mxu0 0
        %1187 = vmatprep.subr.bf16.mxu0 0
        %1188 = vmatpush1.bf16.xpose.msra.mxu0 0
        %1189 = vmatprep.subr.bf16.mxu0 0
        %1190 = vmatpush1.bf16.xpose.msra.mxu0 0
        %1191 = vmatprep.subr.bf16.mxu0 0
        %1192 = vmatpush1.bf16.xpose.msra.mxu0 0
        %1193 = vmatprep.subr.bf16.mxu0 0
        %1194 = vmatpush1.bf16.xpose.msra.mxu0 0
        %1195 = vmatprep.mubr.bf16.mxu0 0
        %1196 = vmatmul.mubr.bf16.gmra.mrb[0].mxu0 %v1158
        %v1197 = vpop.f32.mrb[0].mxu0
        %v1198 = vadd.f32 %v377, %v1197
        %v1199 = vpop.f32.mrb[0].mxu0
        %v1200 = vpop.f32.mrb[0].mxu0
        %v1201 = vpop.f32.mrb[0].mxu0
        %1202 = vdwg.mxu0
        %v1203 = vsel %vm429, %v1198, -inf
        %1204 = vmax.xlane.f32.xlu0 %v1203
        %v1205 = vpop.xlane.xlu0 %1204
        %v1206 = vsub.f32 %v1198, %v1205
        %v1207 = vmul.f32 %v1206, 1.442695
        %v1208 = vpow.pop %v1207
        %v1209 = vsel %vm429, %v1208, 0.0
        %1210 = vadd.xlane.f32.xlu0 %v1209
        %v1211 = vpop.xlane.xlu0 %1210
        %v1212 = vrcp.pop %v1211
        %v1213 = vmul.f32 %v1208, %v1212
        %v1214 = vpack.c.bf16 %v1213, %v1213
        %1215 = vrot.lane.b32.xlu0 %v984, 48
        %v1216 = vpop.permute.xlu0 %1215
        %v1218 = vsel %vm429, %v1214, 0
        %v1221 = vsel %vm447, %v1216, 0
        %1223 = vmatprep.subr.bf16.mxu0 0
        %1224 = vmatpush1.bf16.msra.mxu0 %v1221
        %1225 = vmatprep.subr.bf16.mxu0 0
        %1226 = vmatpush1.bf16.msra.mxu0 0
        %1227 = vmatprep.subr.bf16.mxu0 0
        %1228 = vmatpush1.bf16.msra.mxu0 0
        %1229 = vmatprep.subr.bf16.mxu0 0
        %1230 = vmatpush1.bf16.msra.mxu0 0
        %1231 = vmatprep.subr.bf16.mxu0 0
        %1232 = vmatpush1.bf16.msra.mxu0 0
        %1233 = vmatprep.subr.bf16.mxu0 0
        %1234 = vmatpush1.bf16.msra.mxu0 0
        %1235 = vmatprep.subr.bf16.mxu0 0
        %1236 = vmatpush1.bf16.msra.mxu0 0
        %1237 = vmatprep.subr.bf16.mxu0 0
        %1238 = vmatpush1.bf16.msra.mxu0 0
        %1239 = vmatprep.subr.bf16.mxu0 0
        %1240 = vmatpush1.bf16.msra.mxu0 0
        %1241 = vmatprep.subr.bf16.mxu0 0
        %1242 = vmatpush1.bf16.msra.mxu0 0
        %1243 = vmatprep.subr.bf16.mxu0 0
        %1244 = vmatpush1.bf16.msra.mxu0 0
        %1245 = vmatprep.subr.bf16.mxu0 0
        %1246 = vmatpush1.bf16.msra.mxu0 0
        %1247 = vmatprep.subr.bf16.mxu0 0
        %1248 = vmatpush1.bf16.msra.mxu0 0
        %1249 = vmatprep.subr.bf16.mxu0 0
        %1250 = vmatpush1.bf16.msra.mxu0 0
        %1251 = vmatprep.subr.bf16.mxu0 0
        %1252 = vmatpush1.bf16.msra.mxu0 0
        %1253 = vmatprep.subr.bf16.mxu0 0
        %1254 = vmatpush1.bf16.msra.mxu0 0
        %1255 = vmatprep.mubr.bf16.mxu0 0
        %1256 = vmatmul.mubr.bf16.gmra.mrb[0].mxu0 %v1218
        %v1257 = vpop.f32.mrb[0].mxu0
        %v1258 = vadd.f32 0.0, %v1257
        %v1259 = vpop.f32.mrb[0].mxu0
        %v1260 = vpop.f32.mrb[0].mxu0
        %v1261 = vpop.f32.mrb[0].mxu0
        %1262 = vdwg.mxu0
        %v1263 = vpack.c.bf16 %v1258, %v1258
        %v1266 = vunpack.c.l.b16 %v1151
        %v1267 = vunpack.c.l.b16 %v1152
        %v1268 = vpack.c.b16 %v1267, %v1266
        %v1271 = vsel %vm382, %v1263, 0
        %1273 = vmatprep.subr.bf16.mxu0 0
        %1274 = vmatpush1.bf16.msra.mxu0 %v1268
        %1275 = vmatprep.subr.bf16.mxu0 0
        %1276 = vmatpush1.bf16.msra.mxu0 0
        %1277 = vmatprep.subr.bf16.mxu0 0
        %1278 = vmatpush1.bf16.msra.mxu0 0
        %1279 = vmatprep.subr.bf16.mxu0 0
        %1280 = vmatpush1.bf16.msra.mxu0 0
        %1281 = vmatprep.subr.bf16.mxu0 0
        %1282 = vmatpush1.bf16.msra.mxu0 0
        %1283 = vmatprep.subr.bf16.mxu0 0
        %1284 = vmatpush1.bf16.msra.mxu0 0
        %1285 = vmatprep.subr.bf16.mxu0 0
        %1286 = vmatpush1.bf16.msra.mxu0 0
        %1287 = vmatprep.subr.bf16.mxu0 0
        %1288 = vmatpush1.bf16.msra.mxu0 0
        %1289 = vmatprep.subr.bf16.mxu0 0
        %1290 = vmatpush1.bf16.msra.mxu0 0
        %1291 = vmatprep.subr.bf16.mxu0 0
        %1292 = vmatpush1.bf16.msra.mxu0 0
        %1293 = vmatprep.subr.bf16.mxu0 0
        %1294 = vmatpush1.bf16.msra.mxu0 0
        %1295 = vmatprep.subr.bf16.mxu0 0
        %1296 = vmatpush1.bf16.msra.mxu0 0
        %1297 = vmatprep.subr.bf16.mxu0 0
        %1298 = vmatpush1.bf16.msra.mxu0 0
        %1299 = vmatprep.subr.bf16.mxu0 0
        %1300 = vmatpush1.bf16.msra.mxu0 0
        %1301 = vmatprep.subr.bf16.mxu0 0
        %1302 = vmatpush1.bf16.msra.mxu0 0
        %1303 = vmatprep.subr.bf16.mxu0 0
        %1304 = vmatpush1.bf16.msra.mxu0 0
        %1305 = vmatprep.mubr.bf16.mxu0 0
        %1306 = vmatmul.mubr.bf16.gmra.mrb[0].mxu0 %v1271
        %v1307 = vpop.f32.mrb[0].mxu0
        %v1308 = vadd.f32 0.0, %v1307
        %v1309 = vpop.f32.mrb[0].mxu0
        %v1310 = vpop.f32.mrb[0].mxu0
        %v1311 = vpop.f32.mrb[0].mxu0
        %1312 = vdwg.mxu0
        %v1313 = vadd.f32 %v1150, %v1308
        %v1314 = vadd.f32 %v898, %v1313
        %v1315 = vsel %vm261, %v1314, 0.0
        %1316 = vadd.xlane.f32.xlu0 %v1315
        %v1317 = vpop.xlane.xlu0 %1316
        %v1318 = vmul.f32 %v1317, %v265
        %v1319 = vsub.f32 %v1314, %v1318
        %v1320 = vmul.f32 %v1319, %v1319
        %v1321 = vsel %vm261, %v1320, 0.0
        %1322 = vadd.xlane.f32.xlu0 %v1321
        %v1323 = vpop.xlane.xlu0 %1322
        %v1324 = vmul.f32 %v1323, %v265
        %v1325 = vadd.f32 %v1324, 1e-05
        %v1326 = vrsqrt.pop %v1325
        %v1327 = vmul.f32 %v1319, %v1326
        %v1328 = vlaneseq
        %v1329 = vshrl.u32 %v1328, 7
        %v1330 = vsub.s32 0, %v1329
        %v1331 = vrot.slane %v903, %v1330
        %v1332 = vmul.f32 %v1327, %v1331
        %v1333 = vlaneseq
        %v1334 = vshrl.u32 %v1333, 7
        %v1335 = vsub.s32 0, %v1334
        %v1336 = vrot.slane %v904, %v1335
        %v1337 = vadd.f32 %v1332, %v1336
        %v1338 = vpack.c.bf16 %v1337, %v1337
        %v1339 = vlaneseq
        %v1340 = vshrl.u32 %v1339, 7
        %v1341 = vsub.s32 0, %v1340
        %v1342 = vrot.slane %v901, %v1341
        %v1347 = vunpack.c.l.b16 %v912
        %v1348 = vunpack.c.l.b16 %v913
        %v1349 = vunpack.c.l.b16 %v914
        %v1350 = vunpack.c.l.b16 %v915
        %v1351 = vpack.c.b16 %v1348, %v1347
        %v1352 = vpack.c.b16 %v1350, %v1349
        %v1356 = vsel %vm261, %v1338, 0
        %1358 = vmatprep.subr.bf16.mxu0 0
        %1359 = vmatpush1.bf16.msra.mxu0 %v1351
        %1360 = vmatprep.subr.bf16.mxu0 0
        %1361 = vmatpush1.bf16.msra.mxu0 %v1352
        %1362 = vmatprep.subr.bf16.mxu0 0
        %1363 = vmatpush1.bf16.msra.mxu0 0
        %1364 = vmatprep.subr.bf16.mxu0 0
        %1365 = vmatpush1.bf16.msra.mxu0 0
        %1366 = vmatprep.subr.bf16.mxu0 0
        %1367 = vmatpush1.bf16.msra.mxu0 0
        %1368 = vmatprep.subr.bf16.mxu0 0
        %1369 = vmatpush1.bf16.msra.mxu0 0
        %1370 = vmatprep.subr.bf16.mxu0 0
        %1371 = vmatpush1.bf16.msra.mxu0 0
        %1372 = vmatprep.subr.bf16.mxu0 0
        %1373 = vmatpush1.bf16.msra.mxu0 0
        %1374 = vmatprep.subr.bf16.mxu0 0
        %1375 = vmatpush1.bf16.msra.mxu0 0
        %1376 = vmatprep.subr.bf16.mxu0 0
        %1377 = vmatpush1.bf16.msra.mxu0 0
        %1378 = vmatprep.subr.bf16.mxu0 0
        %1379 = vmatpush1.bf16.msra.mxu0 0
        %1380 = vmatprep.subr.bf16.mxu0 0
        %1381 = vmatpush1.bf16.msra.mxu0 0
        %1382 = vmatprep.subr.bf16.mxu0 0
        %1383 = vmatpush1.bf16.msra.mxu0 0
        %1384 = vmatprep.subr.bf16.mxu0 0
        %1385 = vmatpush1.bf16.msra.mxu0 0
        %1386 = vmatprep.subr.bf16.mxu0 0
        %1387 = vmatpush1.bf16.msra.mxu0 0
        %1388 = vmatprep.subr.bf16.mxu0 0
        %1389 = vmatpush1.bf16.msra.mxu0 0
        %1390 = vmatprep.mubr.bf16.mxu0 0
        %1391 = vmatmul.mubr.bf16.gmra.mrb[0].mxu0 %v1356
        %v1392 = vpop.f32.mrb[0].mxu0
        %v1393 = vadd.f32 %v1342, %v1392
        %v1394 = vpop.f32.mrb[0].mxu0
        %v1395 = vpop.f32.mrb[0].mxu0
        %v1396 = vpop.f32.mrb[0].mxu0
        %1397 = vdwg.mxu0
        %v1398 = vmul.f32 %v1393, 0.5
        %v1399 = vmul.f32 %v1393, 0.044715
        %v1400 = vmul.f32 %v1399, %v1393
        %v1401 = vmul.f32 %v1400, %v1393
        %v1402 = vadd.f32 %v1393, %v1401
        %v1403 = vmul.f32 %v1402, 0.7978846
        %v1404 = vtanh.pop %v1403
        %v1405 = vadd.f32 %v1404, 1.0
        %v1406 = vmul.f32 %v1398, %v1405
        %v1407 = vpack.c.bf16 %v1406, %v1406
        %v1408 = vlaneseq
        %v1409 = vshrl.u32 %v1408, 7
        %v1410 = vsub.s32 0, %v1409
        %v1411 = vrot.slane %v902, %v1410
        %v1420 = vunpack.c.l.b16 %v916
        %v1421 = vunpack.c.l.b16 %v917
        %v1422 = vunpack.c.l.b16 %v918
        %v1423 = vunpack.c.l.b16 %v919
        %v1424 = vunpack.c.l.b16 %v920
        %v1425 = vunpack.c.l.b16 %v921
        %v1426 = vunpack.c.l.b16 %v922
        %v1427 = vunpack.c.l.b16 %v923
        %v1428 = vpack.c.b16 %v1421, %v1420
        %v1429 = vpack.c.b16 %v1423, %v1422
        %v1430 = vpack.c.b16 %v1425, %v1424
        %v1431 = vpack.c.b16 %v1427, %v1426
        %v1437 = vsel %vm831, %v1407, 0
        %1439 = vmatprep.subr.bf16.mxu0 0
        %1440 = vmatpush1.bf16.msra.mxu0 %v1428
        %1441 = vmatprep.subr.bf16.mxu0 0
        %1442 = vmatpush1.bf16.msra.mxu0 %v1429
        %1443 = vmatprep.subr.bf16.mxu0 0
        %1444 = vmatpush1.bf16.msra.mxu0 %v1430
        %1445 = vmatprep.subr.bf16.mxu0 0
        %1446 = vmatpush1.bf16.msra.mxu0 %v1431
        %1447 = vmatprep.subr.bf16.mxu0 0
        %1448 = vmatpush1.bf16.msra.mxu0 0
        %1449 = vmatprep.subr.bf16.mxu0 0
        %1450 = vmatpush1.bf16.msra.mxu0 0
        %1451 = vmatprep.subr.bf16.mxu0 0
        %1452 = vmatpush1.bf16.msra.mxu0 0
        %1453 = vmatprep.subr.bf16.mxu0 0
        %1454 = vmatpush1.bf16.msra.mxu0 0
        %1455 = vmatprep.subr.bf16.mxu0 0
        %1456 = vmatpush1.bf16.msra.mxu0 0
        %1457 = vmatprep.subr.bf16.mxu0 0
        %1458 = vmatpush1.bf16.msra.mxu0 0
        %1459 = vmatprep.subr.bf16.mxu0 0
        %1460 = vmatpush1.bf16.msra.mxu0 0
        %1461 = vmatprep.subr.bf16.mxu0 0
        %1462 = vmatpush1.bf16.msra.mxu0 0
        %1463 = vmatprep.subr.bf16.mxu0 0
        %1464 = vmatpush1.bf16.msra.mxu0 0
        %1465 = vmatprep.subr.bf16.mxu0 0
        %1466 = vmatpush1.bf16.msra.mxu0 0
        %1467 = vmatprep.subr.bf16.mxu0 0
        %1468 = vmatpush1.bf16.msra.mxu0 0
        %1469 = vmatprep.subr.bf16.mxu0 0
        %1470 = vmatpush1.bf16.msra.mxu0 0
        %1471 = vmatprep.mubr.bf16.mxu0 0
        %1472 = vmatmul.mubr.bf16.gmra.mrb[0].mxu0 %v1437
        %v1473 = vpop.f32.mrb[0].mxu0
        %v1474 = vadd.f32 %v1411, %v1473
        %v1475 = vpop.f32.mrb[0].mxu0
        %v1476 = vpop.f32.mrb[0].mxu0
        %v1477 = vpop.f32.mrb[0].mxu0
        %1478 = vdwg.mxu0
        %v1479 = vadd.f32 %v1337, %v1474
        %v1480 = vsel %vm261, %v1479, 0.0
        %1481 = vadd.xlane.f32.xlu0 %v1480
        %v1482 = vpop.xlane.xlu0 %1481
        %v1483 = vmul.f32 %v1482, %v265
        %v1484 = vsub.f32 %v1479, %v1483
        %v1485 = vmul.f32 %v1484, %v1484
        %v1486 = vsel %vm261, %v1485, 0.0
        %1487 = vadd.xlane.f32.xlu0 %v1486
        %v1488 = vpop.xlane.xlu0 %1487
        %v1489 = vmul.f32 %v1488, %v265
        %v1490 = vadd.f32 %v1489, 1e-05
        %v1491 = vrsqrt.pop %v1490
        %v1492 = vmul.f32 %v1484, %v1491
        %v1493 = vlaneseq
        %v1494 = vshrl.u32 %v1493, 7
        %v1495 = vsub.s32 0, %v1494
        %v1496 = vrot.slane %v905, %v1495
        %v1497 = vmul.f32 %v1492, %v1496
        %v1498 = vlaneseq
        %v1499 = vshrl.u32 %v1498, 7
        %v1500 = vsub.s32 0, %v1499
        %v1501 = vrot.slane %v906, %v1500
        %v1502 = vadd.f32 %v1497, %v1501
        %v1503 = vld [vmem:[#allocation5 + $0x10] sm:$0xf]
        %v1504 = vld [vmem:[#allocation5 + $0x28] sm:$0xf]
        %v1505 = vld [vmem:[#allocation5 + $0x40] sm:$0xf]
        %v1506 = vld [vmem:[#allocation5 + $0x58] sm:$0xf]
        %v1507 = vld [vmem:[#allocation5 + $0x14] sm:$0xf]
        %v1508 = vld [vmem:[#allocation5 + $0x2c] sm:$0xf]
        %v1509 = vld [vmem:[#allocation5 + $0x44] sm:$0xf]
        %v1510 = vld [vmem:[#allocation5 + $0x5c] sm:$0xf]
        %v1511 = vld [vmem:[#allocation7 + $0x12] sm:$0x1]
        %v1512 = vld [vmem:[#allocation7 + $0x13] sm:$0x1]
        %v1513 = vpack.c.bf16 %v1502, %v1502
        %v1514 = vlaneseq
        %v1515 = vshrl.u32 %v1514, 7
        %v1516 = vsub.s32 0, %v1515
        %v1517 = vrot.slane %v1511, %v1516
        %v1522 = vunpack.c.l.b16 %v1503
        %v1523 = vunpack.c.l.b16 %v1504
        %v1524 = vunpack.c.l.b16 %v1505
        %v1525 = vunpack.c.l.b16 %v1506
        %v1526 = vpack.c.b16 %v1523, %v1522
        %v1527 = vpack.c.b16 %v1525, %v1524
        %v1531 = vsel %vm261, %v1513, 0
        %1533 = vmatprep.subr.bf16.mxu0 0
        %1534 = vmatpush1.bf16.msra.mxu0 %v1526
        %1535 = vmatprep.subr.bf16.mxu0 0
        %1536 = vmatpush1.bf16.msra.mxu0 %v1527
        %1537 = vmatprep.subr.bf16.mxu0 0
        %1538 = vmatpush1.bf16.msra.mxu0 0
        %1539 = vmatprep.subr.bf16.mxu0 0
        %1540 = vmatpush1.bf16.msra.mxu0 0
        %1541 = vmatprep.subr.bf16.mxu0 0
        %1542 = vmatpush1.bf16.msra.mxu0 0
        %1543 = vmatprep.subr.bf16.mxu0 0
        %1544 = vmatpush1.bf16.msra.mxu0 0
        %1545 = vmatprep.subr.bf16.mxu0 0
        %1546 = vmatpush1.bf16.msra.mxu0 0
        %1547 = vmatprep.subr.bf16.mxu0 0
        %1548 = vmatpush1.bf16.msra.mxu0 0
        %1549 = vmatprep.subr.bf16.mxu0 0
        %1550 = vmatpush1.bf16.msra.mxu0 0
        %1551 = vmatprep.subr.bf16.mxu0 0
        %1552 = vmatpush1.bf16.msra.mxu0 0
        %1553 = vmatprep.subr.bf16.mxu0 0
        %1554 = vmatpush1.bf16.msra.mxu0 0
        %1555 = vmatprep.subr.bf16.mxu0 0
        %1556 = vmatpush1.bf16.msra.mxu0 0
        %1557 = vmatprep.subr.bf16.mxu0 0
        %1558 = vmatpush1.bf16.msra.mxu0 0
        %1559 = vmatprep.subr.bf16.mxu0 0
        %1560 = vmatpush1.bf16.msra.mxu0 0
        %1561 = vmatprep.subr.bf16.mxu0 0
        %1562 = vmatpush1.bf16.msra.mxu0 0
        %1563 = vmatprep.subr.bf16.mxu0 0
        %1564 = vmatpush1.bf16.msra.mxu0 0
        %1565 = vmatprep.mubr.bf16.mxu0 0
        %1566 = vmatmul.mubr.bf16.gmra.mrb[0].mxu0 %v1531
        %v1567 = vpop.f32.mrb[0].mxu0
        %v1568 = vadd.f32 %v1517, %v1567
        %v1569 = vpop.f32.mrb[0].mxu0
        %v1570 = vpop.f32.mrb[0].mxu0
        %v1571 = vpop.f32.mrb[0].mxu0
        %1572 = vdwg.mxu0
        %v1573 = vtanh.pop %v1568
        %v1574 = vpack.c.bf16 %v1573, %v1573
        %v1575 = vlaneseq
        %v1576 = vshrl.u32 %v1575, 7
        %v1577 = vsub.s32 0, %v1576
        %v1578 = vrot.slane %v1512, %v1577
        %v1583 = vunpack.c.l.b16 %v1507
        %v1584 = vunpack.c.l.b16 %v1508
        %v1585 = vunpack.c.l.b16 %v1509
        %v1586 = vunpack.c.l.b16 %v1510
        %v1587 = vpack.c.b16 %v1584, %v1583
        %v1588 = vpack.c.b16 %v1586, %v1585
        %v1592 = vsel %vm261, %v1574, 0
        %1594 = vmatprep.subr.bf16.mxu0 0
        %1595 = vmatpush1.bf16.msra.mxu0 %v1587
        %1596 = vmatprep.subr.bf16.mxu0 0
        %1597 = vmatpush1.bf16.msra.mxu0 %v1588
        %1598 = vmatprep.subr.bf16.mxu0 0
        %1599 = vmatpush1.bf16.msra.mxu0 0
        %1600 = vmatprep.subr.bf16.mxu0 0
        %1601 = vmatpush1.bf16.msra.mxu0 0
        %1602 = vmatprep.subr.bf16.mxu0 0
        %1603 = vmatpush1.bf16.msra.mxu0 0
        %1604 = vmatprep.subr.bf16.mxu0 0
        %1605 = vmatpush1.bf16.msra.mxu0 0
        %1606 = vmatprep.subr.bf16.mxu0 0
        %1607 = vmatpush1.bf16.msra.mxu0 0
        %1608 = vmatprep.subr.bf16.mxu0 0
        %1609 = vmatpush1.bf16.msra.mxu0 0
        %1610 = vmatprep.subr.bf16.mxu0 0
        %1611 = vmatpush1.bf16.msra.mxu0 0
        %1612 = vmatprep.subr.bf16.mxu0 0
        %1613 = vmatpush1.bf16.msra.mxu0 0
        %1614 = vmatprep.subr.bf16.mxu0 0
        %1615 = vmatpush1.bf16.msra.mxu0 0
        %1616 = vmatprep.subr.bf16.mxu0 0
        %1617 = vmatpush1.bf16.msra.mxu0 0
        %1618 = vmatprep.subr.bf16.mxu0 0
        %1619 = vmatpush1.bf16.msra.mxu0 0
        %1620 = vmatprep.subr.bf16.mxu0 0
        %1621 = vmatpush1.bf16.msra.mxu0 0
        %1622 = vmatprep.subr.bf16.mxu0 0
        %1623 = vmatpush1.bf16.msra.mxu0 0
        %1624 = vmatprep.subr.bf16.mxu0 0
        %1625 = vmatpush1.bf16.msra.mxu0 0
        %1626 = vmatprep.mubr.bf16.mxu0 0
        %1627 = vmatmul.mubr.bf16.gmra.mrb[0].mxu0 %v1592
        %v1628 = vpop.f32.mrb[0].mxu0
        %v1629 = vadd.f32 %v1578, %v1628
        %v1630 = vpop.f32.mrb[0].mxu0
        %v1631 = vpop.f32.mrb[0].mxu0
        %v1632 = vpop.f32.mrb[0].mxu0
        %1633 = vdwg.mxu0
        %1634 = vst [vmem:[%s252] sm:$0xff] %v1629
        %s1635 = sand.u32 %s124, 1
        %s1636 = scalar_lea.sflag [#allocation4], %s1635
        %s1637 = sand.u32 %s124, 1
        %s1638 = smul.addr %s1637, 8
        %s1639 = scalar_lea.vmem [#allocation8], %s1638
        // Predicated region
        $region49: #{tpu_custom_call.1} parent=35 // pred_check
          %p1640 = pneg %p134
        $region50: #{tpu_custom_call.1} parent=35 // pred_check_branch
          %1642 = sbr.rel (%p1640) target = $region52
        $region51: #{tpu_custom_call.1} parent=35 // pred_region
          %s1644 = ssub.s32 128, 128
          %1645 = vsyncadd %s1636, %s1644
          %s1646 = smul.addr %s22, 128
          %s1647 = scalar_lea.hbm %s4, %s1646
          %s1649 = sshll.u32 %s1639, 4
          %s1650 = int_to_ptr.vmem [resolvable:$true] %s1649
          %1652 = dma.vmem_to_hbm [thread:$0]  %s1650, 128, %s1647, %s1636
        $region52: #{tpu_custom_call.1} parent=35 // pred_fallthru
          _
      $region36: #{tpu_custom_call.1} parent=5 // pred_fallthru
        _
      %p1653 = scmp.le.s32.totalorder 2, %s17
      // Predicated region
      $region53: #{tpu_custom_call.1} parent=5 // pred_check
        %p1654 = pneg %p1653
      $region54: #{tpu_custom_call.1} parent=5 // pred_check_branch
        %1656 = sbr.rel (%p1654) target = $region56
      $region55: #{tpu_custom_call.1} parent=5 // pred_region
        %s1657 = ssub.s32 %s17, 2
        // Predicated region
        $region57: #{tpu_custom_call.1} parent=55 // pred_check
          %p1658 = pneg %p140
        $region58: #{tpu_custom_call.1} parent=55 // pred_check_branch
          %1660 = sbr.rel (%p1658) target = $region60
        $region59: #{tpu_custom_call.1} parent=55 // pred_region
          %s1661 = sand.u32 %s125, 1
          %s1662 = scalar_lea.sflag [#allocation4], %s1661
          %s1663 = sand.u32 %s125, 1
          %s1664 = smul.addr %s1663, 8
          %s1665 = scalar_lea.vmem [#allocation8], %s1664
          %1666 = dma.done %s1662, 128
        $region60: #{tpu_custom_call.1} parent=55 // pred_fallthru
          _
      $region56: #{tpu_custom_call.1} parent=5 // pred_fallthru
        _
    $region6: #{tpu_custom_call.1} parent=1 // loop_footer
      %s21 = sadd.s32 1, %s17
    $region7: #{tpu_custom_call.1} parent=1 // loop_footer_branch
      %16 = sbr.rel target = $region3
    $region8: #{tpu_custom_call.1} parent=1 // loop_exit
      _
    %1667 = vsyncpa [#allocation3], 1
    %s1668 = scalar_lea.sflag [#allocation3], 1
    %1669 = vsyncpa %s1668, 1
    %1670 = vsyncpa [#allocation6], 1
    %1671 = vsyncpa [#allocation4], 1
    %s1672 = scalar_lea.sflag [#allocation4], 1
    %1673 = vsyncpa %s1672, 1

</llo_original>
